<compile_context>
chip_gen: v5e
topology: v5e:2x2
jax: 0.10.0
libtpu: 0.0.40
codegen_flags: <defaults>
</compile_context>

<pallas_src>
import jax
import jax.numpy as jnp
from jax.experimental import pallas as pl
from jax.experimental.pallas import tpu as pltpu

# ----------------------------- configuration --------------------------------
B = 128            # batch size (review item 1: fill the lane tiles with series)
D = 4              # target_dim == input_dim (with lags_seq=[1])
L = 16             # context_length == model_input_length
H = 8              # prediction_length
HIST = 24          # history_length  (>= max(lags) + context_length)
NFEAT = 3          # number of time features
LAGS = [1]         # lags_seq
STACKS = 3         # number of N-BEATS generic blocks
LINEAR_LAYERS = 4  # FC layers per block
HIDDEN = 32        # layer_size
EMBED_DIM = 1      # embedding dim of target_dimension_indicator

TILE_N = 256                  # lane tile over series axis (fills v6e/v7x MXU width)
WEIGHT_DTYPE = jnp.bfloat16   # bf16 MXU inputs, f32 accumulation

# sublane-aligned fused-head split (review item 7): slices head[:L]/head[L:]
# must never cross an (8,128) f32 tile boundary.
assert L % 8 == 0 and H % 8 == 0 and (L + H) % 8 == 0
assert TILE_N % 128 == 0


# ------------------------------ Pallas kernel --------------------------------
def nbeats_stack_kernel(xT_ref, maskT_ref,
                        w0T_ref, b0_ref, whT_ref, bh_ref,
                        wheadT_ref, bhead_ref, out_ref):
    """All N-BEATS blocks for one lane-tile of series, in a single invocation.

    Layout: time on sublanes, series on lanes.
      xT, maskT : (L, TILE_N)     out : (H, TILE_N)
      w0T       : (STACKS, HIDDEN, L)             b0    : (STACKS, HIDDEN, TILE_N)
      whT       : (STACKS*(LL-1), HIDDEN, HIDDEN) bh    : (STACKS*(LL-1), HIDDEN, TILE_N)
      wheadT    : (STACKS, L+H, HIDDEN)           bhead : (STACKS, L+H, TILE_N)
    Biases are pre-broadcast to TILE_N lanes (plain VPU adds, no broadcast op).
    """
    mask = maskT_ref[...]
    resid = xT_ref[...] * mask                               # (L, N) f32
    fc = jnp.zeros(out_ref.shape, jnp.float32)               # (H, N) accumulator

    for s in range(STACKS):                                  # fully unrolled
        h = jnp.maximum(
            jnp.dot(w0T_ref[s], resid.astype(WEIGHT_DTYPE),
                    preferred_element_type=jnp.float32) + b0_ref[s], 0.0)
        for i in range(LINEAR_LAYERS - 1):
            li = s * (LINEAR_LAYERS - 1) + i
            h = jnp.maximum(
                jnp.dot(whT_ref[li], h.astype(WEIGHT_DTYPE),
                        preferred_element_type=jnp.float32) + bh_ref[li], 0.0)
        # fused backcast|forecast head: one (L+H, HIDDEN) @ (HIDDEN, N) matmul
        head = jnp.dot(wheadT_ref[s], h.astype(WEIGHT_DTYPE),
                       preferred_element_type=jnp.float32) + bhead_ref[s]
        resid = (resid - head[:L, :]) * mask                 # masked residual
        fc = fc + head[L:, :]                                # forecast accum

    out_ref[...] = fc


def nbeats_model_forward(xT, maskT, block_params):
    """xT, maskT: (L, Np) f32 with Np a multiple of TILE_N.  Returns (H, Np)."""
    w0T, b0, whT, bh, wheadT, bhead = block_params
    Np = xT.shape[1]
    n_tiles = Np // TILE_N

    flops = 2 * Np * STACKS * (
        L * HIDDEN + (LINEAR_LAYERS - 1) * HIDDEN * HIDDEN + HIDDEN * (L + H))
    param_bytes = sum(int(a.size) * a.dtype.itemsize
                      for a in (w0T, b0, whT, bh, wheadT, bhead))
    bytes_accessed = (xT.size + maskT.size + H * Np) * 4 + param_bytes

    # Weights/biases: full-block, constant index_map -> DMA'd once, resident
    # across grid steps (kept at default buffering; see header comment).
    def const_spec(arr):
        return pl.BlockSpec(arr.shape, lambda i: (0, 0, 0))

    grid_spec = pl.GridSpec(
        grid=(n_tiles,),
        in_specs=[
            pl.BlockSpec((L, TILE_N), lambda i: (0, i)),          # xT
            pl.BlockSpec((L, TILE_N), lambda i: (0, i)),          # maskT
            const_spec(w0T),                                      # w0T
            const_spec(b0),                                       # b0
            const_spec(whT),                                      # whT
            const_spec(bh),                                       # bh
            const_spec(wheadT),                                   # wheadT
            const_spec(bhead),                                    # bhead
        ],
        out_specs=pl.BlockSpec((H, TILE_N), lambda i: (0, i)),
    )

    return pl.pallas_call(
        nbeats_stack_kernel,
        out_shape=jax.ShapeDtypeStruct((H, Np), jnp.float32),
        grid_spec=grid_spec,
        compiler_params=pltpu.CompilerParams(
            dimension_semantics=("parallel",)),       # 2 tiles -> both v7x TCs busy
        cost_estimate=pl.CostEstimate(
            flops=int(flops), transcendentals=0,
            bytes_accessed=int(bytes_accessed)),
    )(xT, maskT, w0T, b0, whT, bh, wheadT, bhead)


# ------------------------------ JAX glue -------------------------------------
def mean_scaler(data, weights, minimum_scale=1e-10):
    """MeanScaler(keepdim=True): data, weights (B, L, D) -> scale (B, 1, D)."""
    ts_sum = jnp.sum(jnp.abs(data) * weights, axis=1)            # (B, D)
    num_obs = jnp.sum(weights, axis=1)                           # (B, D)
    scale = ts_sum / jnp.maximum(num_obs, 1.0)
    default_scale = jnp.sum(ts_sum, axis=0) / jnp.maximum(
        jnp.sum(num_obs, axis=0), 1.0)
    scale = jnp.where(num_obs > 0, scale, default_scale[None, :])
    scale = jnp.maximum(scale, minimum_scale)
    return scale[:, None, :]


def get_lagged_subsequences(sequence, indices, subsequences_length):
    """sequence (B, T, D) -> lagged (B, S, D, I)."""
    T = sequence.shape[1]
    lagged = []
    for lag in indices:
        begin = T - lag - subsequences_length
        end = T - lag
        lagged.append(sequence[:, begin:end, :][:, None])        # (B,1,S,D)
    out = jnp.concatenate(lagged, axis=1)                        # (B,I,S,D)
    return jnp.transpose(out, (0, 2, 3, 1))                      # (B,S,D,I)


def create_network_input(past_time_feat, past_target, past_observed_values,
                         past_is_pad, target_dimension_indicator, embed_weight):
    past_observed_values = jnp.minimum(past_observed_values,
                                       1.0 - past_is_pad[..., None])
    time_feat = past_time_feat[:, -L:, :]                        # (B, L, F)
    lags = get_lagged_subsequences(past_target, LAGS, L)         # (B, L, D, I)
    scale = mean_scaler(past_target[:, -L:, :],
                        past_observed_values[:, -L:, :])         # (B, 1, D)
    lags_scaled = lags / scale[..., None]
    index_embeddings = embed_weight[target_dimension_indicator]  # (B, D, E)
    input_lags = lags_scaled.reshape(-1, L, len(LAGS) * D)       # (B, L, I*D)
    rep_emb = jnp.broadcast_to(index_embeddings[:, None],
                               (B, L, D, EMBED_DIM)).reshape(-1, L, D * EMBED_DIM)
    past_is_pad_c = past_is_pad[:, -L:]                          # (B, L)
    return input_lags, time_feat, rep_emb, past_is_pad_c, scale


@jax.jit
def nbeats_prediction_forward(past_target, future_target, past_is_pad,
                              past_time_feat, future_time_feat,
                              past_observed_values, future_observed_values,
                              target_dimension_indicator,
                              embed_weight, block_params):
    # prediction forward: future_{target,time_feat,observed_values} unused
    # (create_network_input is called with future_* = None in the module).
    x_ts, x_tf, x_s, past_is_pad_c, scale = create_network_input(
        past_time_feat, past_target, past_observed_values,
        past_is_pad, target_dimension_indicator, embed_weight)

    x_ts = x_ts[:, :L, :]
    pad_mask = jnp.where(past_is_pad_c == 1, 0.0, 1.0)           # (B, L)

    # Lane-major layout: time on sublanes, series on lanes.
    # (B, L, D) -> (L, B*D) with column index b*D + d.
    N = B * D
    xT = jnp.transpose(x_ts, (1, 0, 2)).reshape(L, N).astype(jnp.float32)
    maskT = jnp.repeat(jnp.transpose(pad_mask, (1, 0)), D,
                       axis=1).astype(jnp.float32)               # (L, B*D)

    Np = pl.cdiv(N, TILE_N) * TILE_N                             # pad lanes to TILE_N
    pad = Np - N
    xT = jnp.pad(xT, ((0, 0), (0, pad)))
    maskT = jnp.pad(maskT, ((0, 0), (0, pad)))

    fcT = nbeats_model_forward(xT, maskT, block_params)          # (H, Np)
    fc = jnp.transpose(fcT[:, :N], (1, 0)).reshape(B, D, H)      # (B, D, H)
    fc = jnp.transpose(fc, (0, 2, 1))                            # (B, H, D)

    forecast = fc * scale                                        # (B,1,D) bcast
    return forecast[:, None, :, :]                               # (B, 1, H, D)


# --------------------------- deterministic params ----------------------------
def init_params(key):
    k = jax.random.split(key, 6)
    embed_weight = 0.1 * jax.random.normal(k[0], (D, EMBED_DIM), jnp.float32)
    w0 = 0.1 * jax.random.normal(k[1], (STACKS, L, HIDDEN), jnp.float32)
    b0 = jnp.zeros((STACKS, 1, HIDDEN), jnp.float32)
    wh = 0.1 * jax.random.normal(
        k[2], (STACKS, LINEAR_LAYERS - 1, HIDDEN, HIDDEN), jnp.float32)
    bh = jnp.zeros((STACKS, LINEAR_LAYERS - 1, 1, HIDDEN), jnp.float32)
    wb = 0.1 * jax.random.normal(k[3], (STACKS, HIDDEN, L), jnp.float32)
    bb = jnp.zeros((STACKS, 1, L), jnp.float32)
    wf = 0.1 * jax.random.normal(k[4], (STACKS, HIDDEN, H), jnp.float32)
    bf = jnp.zeros((STACKS, 1, H), jnp.float32)
    return embed_weight, (w0, b0, wh, bh, wb, bb, wf, bf)


def prepare_block_params(raw):
    """Transpose to lane-major kernel layout, fuse heads, pre-broadcast biases
    to TILE_N lanes (review item 4), cast matmul weights to bf16."""
    w0, b0, wh, bh, wb, bb, wf, bf = raw
    nlh = STACKS * (LINEAR_LAYERS - 1)

    w0T = jnp.transpose(w0, (0, 2, 1)).astype(WEIGHT_DTYPE)          # (S,HID,L)
    whT = jnp.transpose(wh, (0, 1, 3, 2)).reshape(
        nlh, HIDDEN, HIDDEN).astype(WEIGHT_DTYPE)                    # (S*3,HID,HID)
    w_head = jnp.concatenate([wb, wf], axis=2)                       # (S,HID,L+H)
    wheadT = jnp.transpose(w_head, (0, 2, 1)).astype(WEIGHT_DTYPE)   # (S,L+H,HID)

    # biases: lane-major and pre-broadcast to TILE_N lanes -> plain VPU adds
    b0B = jnp.broadcast_to(jnp.transpose(b0, (0, 2, 1)),
                           (STACKS, HIDDEN, TILE_N)).astype(jnp.float32)
    bhB = jnp.broadcast_to(
        jnp.transpose(bh, (0, 1, 3, 2)).reshape(nlh, HIDDEN, 1),
        (nlh, HIDDEN, TILE_N)).astype(jnp.float32)
    b_head = jnp.concatenate([bb, bf], axis=2)                       # (S,1,L+H)
    bheadB = jnp.broadcast_to(jnp.transpose(b_head, (0, 2, 1)),
                              (STACKS, L + H, TILE_N)).astype(jnp.float32)
    return w0T, b0B, whT, bhB, wheadT, bheadB


# --------------------------------- main ---------------------------------------
if __name__ == "__main__":
    key = jax.random.PRNGKey(0)
    k_in = jax.random.split(key, 8)

    past_target = jax.random.normal(k_in[0], (B, HIST, D), jnp.float32)
    future_target = jax.random.normal(k_in[1], (B, H, D), jnp.float32)
    # mark the first two history steps of batch element 0 as padded
    past_is_pad = jnp.zeros((B, HIST), jnp.float32).at[0, :2].set(1.0)
    past_time_feat = jax.random.normal(k_in[2], (B, HIST, NFEAT), jnp.float32)
    future_time_feat = jax.random.normal(k_in[3], (B, H, NFEAT), jnp.float32)
    past_observed_values = jnp.ones((B, HIST, D), jnp.float32)
    future_observed_values = jnp.ones((B, H, D), jnp.float32)
    target_dimension_indicator = jnp.broadcast_to(jnp.arange(D), (B, D))

    embed_weight, raw_params = init_params(jax.random.PRNGKey(42))
    block_params = jax.tree.map(jax.block_until_ready,
                                prepare_block_params(raw_params))

    out = nbeats_prediction_forward(
        past_target, future_target, past_is_pad, past_time_feat,
        future_time_feat, past_observed_values, future_observed_values,
        target_dimension_indicator, embed_weight, block_params)
    out = jax.block_until_ready(out)

    assert out.shape == (B, 1, H, D), out.shape
    assert jnp.all(jnp.isfinite(out))
    print("KERNEL_OK")
</pallas_src>

<mosaic_0001>
module attributes {stable_mosaic.version = 11 : i64} {
  func.func @nbeats_stack_kernel(%arg0: i32, %arg1: memref<16x256xf32, #tpu.memory_space<vmem>>, %arg2: memref<16x256xf32, #tpu.memory_space<vmem>>, %arg3: memref<3x32x16xbf16, #tpu.memory_space<vmem>>, %arg4: memref<3x32x256xf32, #tpu.memory_space<vmem>>, %arg5: memref<9x32x32xbf16, #tpu.memory_space<vmem>>, %arg6: memref<9x32x256xf32, #tpu.memory_space<vmem>>, %arg7: memref<3x24x32xbf16, #tpu.memory_space<vmem>>, %arg8: memref<3x24x256xf32, #tpu.memory_space<vmem>>, %arg9: memref<8x256xf32, #tpu.memory_space<vmem>>) attributes {dimension_semantics = [#tpu.dimension_semantics<parallel>], iteration_bounds = array<i64: 2>, scalar_prefetch = 0 : i64, scratch_operands = 0 : i64, tpu.core_type = #tpu.core_type<tc>, window_params = [{transform_indices = @transform_0, window_bounds = array<i64: 16, 256>}, {transform_indices = @transform_1, window_bounds = array<i64: 16, 256>}, {pipeline_mode = #tpu.pipeline_mode<synchronous>, transform_indices = @transform_2, window_bounds = array<i64: 3, 32, 16>}, {pipeline_mode = #tpu.pipeline_mode<synchronous>, transform_indices = @transform_3, window_bounds = array<i64: 3, 32, 256>}, {pipeline_mode = #tpu.pipeline_mode<synchronous>, transform_indices = @transform_4, window_bounds = array<i64: 9, 32, 32>}, {pipeline_mode = #tpu.pipeline_mode<synchronous>, transform_indices = @transform_5, window_bounds = array<i64: 9, 32, 256>}, {pipeline_mode = #tpu.pipeline_mode<synchronous>, transform_indices = @transform_6, window_bounds = array<i64: 3, 24, 32>}, {pipeline_mode = #tpu.pipeline_mode<synchronous>, transform_indices = @transform_7, window_bounds = array<i64: 3, 24, 256>}, {transform_indices = @transform_8, window_bounds = array<i64: 8, 256>}]} {
    %c0 = arith.constant 0 : index
    %c0_0 = arith.constant 0 : index
    %0 = vector.load %arg2[%c0, %c0_0] : memref<16x256xf32, #tpu.memory_space<vmem>>, vector<16x256xf32>
    %c0_1 = arith.constant 0 : index
    %c0_2 = arith.constant 0 : index
    %1 = vector.load %arg1[%c0_1, %c0_2] : memref<16x256xf32, #tpu.memory_space<vmem>>, vector<16x256xf32>
    %2 = arith.mulf %1, %0 : vector<16x256xf32>
    %cst = arith.constant 0.000000e+00 : f32
    %3 = vector.broadcast %cst : f32 to vector<8x256xf32>
    %c0_3 = arith.constant 0 : index
    %c0_4 = arith.constant 0 : index
    %c0_5 = arith.constant 0 : index
    %4 = vector.load %arg3[%c0_3, %c0_4, %c0_5] : memref<3x32x16xbf16, #tpu.memory_space<vmem>>, vector<1x32x16xbf16>
    %5 = vector.shape_cast %4 : vector<1x32x16xbf16> to vector<32x16xbf16>
    %6 = arith.truncf %2 : vector<16x256xf32> to vector<16x256xbf16>
    %cst_6 = arith.constant dense<0.000000e+00> : vector<32x256xf32>
    %7 = tpu.matmul %5, %6, %cst_6 {dimension_numbers = #tpu.dot_dimension_numbers<[1], [0], [0], [1], [0, 0, 1, 1], [], []>} : vector<32x16xbf16>, vector<16x256xbf16>, vector<32x256xf32> -> vector<32x256xf32>
    %c0_7 = arith.constant 0 : index
    %c0_8 = arith.constant 0 : index
    %c0_9 = arith.constant 0 : index
    %8 = vector.load %arg4[%c0_7, %c0_8, %c0_9] : memref<3x32x256xf32, #tpu.memory_space<vmem>>, vector<1x32x256xf32>
    %9 = vector.shape_cast %8 : vector<1x32x256xf32> to vector<32x256xf32>
    %10 = arith.addf %7, %9 : vector<32x256xf32>
    %cst_10 = arith.constant 0.000000e+00 : f32
    %11 = vector.broadcast %cst_10 : f32 to vector<32x256xf32>
    %12 = arith.maximumf %10, %11 : vector<32x256xf32>
    %c0_11 = arith.constant 0 : index
    %c0_12 = arith.constant 0 : index
    %c0_13 = arith.constant 0 : index
    %13 = vector.load %arg5[%c0_11, %c0_12, %c0_13] : memref<9x32x32xbf16, #tpu.memory_space<vmem>>, vector<1x32x32xbf16>
    %14 = vector.shape_cast %13 : vector<1x32x32xbf16> to vector<32x32xbf16>
    %15 = arith.truncf %12 : vector<32x256xf32> to vector<32x256xbf16>
    %cst_14 = arith.constant dense<0.000000e+00> : vector<32x256xf32>
    %16 = tpu.matmul %14, %15, %cst_14 {dimension_numbers = #tpu.dot_dimension_numbers<[1], [0], [0], [1], [0, 0, 1, 1], [], []>} : vector<32x32xbf16>, vector<32x256xbf16>, vector<32x256xf32> -> vector<32x256xf32>
    %c0_15 = arith.constant 0 : index
    %c0_16 = arith.constant 0 : index
    %c0_17 = arith.constant 0 : index
    %17 = vector.load %arg6[%c0_15, %c0_16, %c0_17] : memref<9x32x256xf32, #tpu.memory_space<vmem>>, vector<1x32x256xf32>
    %18 = vector.shape_cast %17 : vector<1x32x256xf32> to vector<32x256xf32>
    %19 = arith.addf %16, %18 : vector<32x256xf32>
    %cst_18 = arith.constant 0.000000e+00 : f32
    %20 = vector.broadcast %cst_18 : f32 to vector<32x256xf32>
    %21 = arith.maximumf %19, %20 : vector<32x256xf32>
    %c1 = arith.constant 1 : index
    %c0_19 = arith.constant 0 : index
    %c0_20 = arith.constant 0 : index
    %22 = vector.load %arg5[%c1, %c0_19, %c0_20] : memref<9x32x32xbf16, #tpu.memory_space<vmem>>, vector<1x32x32xbf16>
    %23 = vector.shape_cast %22 : vector<1x32x32xbf16> to vector<32x32xbf16>
    %24 = arith.truncf %21 : vector<32x256xf32> to vector<32x256xbf16>
    %cst_21 = arith.constant dense<0.000000e+00> : vector<32x256xf32>
    %25 = tpu.matmul %23, %24, %cst_21 {dimension_numbers = #tpu.dot_dimension_numbers<[1], [0], [0], [1], [0, 0, 1, 1], [], []>} : vector<32x32xbf16>, vector<32x256xbf16>, vector<32x256xf32> -> vector<32x256xf32>
    %c1_22 = arith.constant 1 : index
    %c0_23 = arith.constant 0 : index
    %c0_24 = arith.constant 0 : index
    %26 = vector.load %arg6[%c1_22, %c0_23, %c0_24] : memref<9x32x256xf32, #tpu.memory_space<vmem>>, vector<1x32x256xf32>
    %27 = vector.shape_cast %26 : vector<1x32x256xf32> to vector<32x256xf32>
    %28 = arith.addf %25, %27 : vector<32x256xf32>
    %cst_25 = arith.constant 0.000000e+00 : f32
    %29 = vector.broadcast %cst_25 : f32 to vector<32x256xf32>
    %30 = arith.maximumf %28, %29 : vector<32x256xf32>
    %c2 = arith.constant 2 : index
    %c0_26 = arith.constant 0 : index
    %c0_27 = arith.constant 0 : index
    %31 = vector.load %arg5[%c2, %c0_26, %c0_27] : memref<9x32x32xbf16, #tpu.memory_space<vmem>>, vector<1x32x32xbf16>
    %32 = vector.shape_cast %31 : vector<1x32x32xbf16> to vector<32x32xbf16>
    %33 = arith.truncf %30 : vector<32x256xf32> to vector<32x256xbf16>
    %cst_28 = arith.constant dense<0.000000e+00> : vector<32x256xf32>
    %34 = tpu.matmul %32, %33, %cst_28 {dimension_numbers = #tpu.dot_dimension_numbers<[1], [0], [0], [1], [0, 0, 1, 1], [], []>} : vector<32x32xbf16>, vector<32x256xbf16>, vector<32x256xf32> -> vector<32x256xf32>
    %c2_29 = arith.constant 2 : index
    %c0_30 = arith.constant 0 : index
    %c0_31 = arith.constant 0 : index
    %35 = vector.load %arg6[%c2_29, %c0_30, %c0_31] : memref<9x32x256xf32, #tpu.memory_space<vmem>>, vector<1x32x256xf32>
    %36 = vector.shape_cast %35 : vector<1x32x256xf32> to vector<32x256xf32>
    %37 = arith.addf %34, %36 : vector<32x256xf32>
    %cst_32 = arith.constant 0.000000e+00 : f32
    %38 = vector.broadcast %cst_32 : f32 to vector<32x256xf32>
    %39 = arith.maximumf %37, %38 : vector<32x256xf32>
    %c0_33 = arith.constant 0 : index
    %c0_34 = arith.constant 0 : index
    %c0_35 = arith.constant 0 : index
    %40 = vector.load %arg7[%c0_33, %c0_34, %c0_35] : memref<3x24x32xbf16, #tpu.memory_space<vmem>>, vector<1x24x32xbf16>
    %41 = vector.shape_cast %40 : vector<1x24x32xbf16> to vector<24x32xbf16>
    %42 = arith.truncf %39 : vector<32x256xf32> to vector<32x256xbf16>
    %cst_36 = arith.constant dense<0.000000e+00> : vector<24x256xf32>
    %43 = tpu.matmul %41, %42, %cst_36 {dimension_numbers = #tpu.dot_dimension_numbers<[1], [0], [0], [1], [0, 0, 1, 1], [], []>} : vector<24x32xbf16>, vector<32x256xbf16>, vector<24x256xf32> -> vector<24x256xf32>
    %c0_37 = arith.constant 0 : index
    %c0_38 = arith.constant 0 : index
    %c0_39 = arith.constant 0 : index
    %44 = vector.load %arg8[%c0_37, %c0_38, %c0_39] : memref<3x24x256xf32, #tpu.memory_space<vmem>>, vector<1x24x256xf32>
    %45 = vector.shape_cast %44 : vector<1x24x256xf32> to vector<24x256xf32>
    %46 = arith.addf %43, %45 : vector<24x256xf32>
    %47 = vector.extract_strided_slice %46 {offsets = [0, 0], sizes = [16, 256], strides = [1, 1]} : vector<24x256xf32> to vector<16x256xf32>
    %48 = arith.subf %2, %47 : vector<16x256xf32>
    %49 = arith.mulf %48, %0 : vector<16x256xf32>
    %50 = vector.extract_strided_slice %46 {offsets = [16, 0], sizes = [8, 256], strides = [1, 1]} : vector<24x256xf32> to vector<8x256xf32>
    %51 = arith.addf %3, %50 : vector<8x256xf32>
    %c1_40 = arith.constant 1 : index
    %c0_41 = arith.constant 0 : index
    %c0_42 = arith.constant 0 : index
    %52 = vector.load %arg3[%c1_40, %c0_41, %c0_42] : memref<3x32x16xbf16, #tpu.memory_space<vmem>>, vector<1x32x16xbf16>
    %53 = vector.shape_cast %52 : vector<1x32x16xbf16> to vector<32x16xbf16>
    %54 = arith.truncf %49 : vector<16x256xf32> to vector<16x256xbf16>
    %cst_43 = arith.constant dense<0.000000e+00> : vector<32x256xf32>
    %55 = tpu.matmul %53, %54, %cst_43 {dimension_numbers = #tpu.dot_dimension_numbers<[1], [0], [0], [1], [0, 0, 1, 1], [], []>} : vector<32x16xbf16>, vector<16x256xbf16>, vector<32x256xf32> -> vector<32x256xf32>
    %c1_44 = arith.constant 1 : index
    %c0_45 = arith.constant 0 : index
    %c0_46 = arith.constant 0 : index
    %56 = vector.load %arg4[%c1_44, %c0_45, %c0_46] : memref<3x32x256xf32, #tpu.memory_space<vmem>>, vector<1x32x256xf32>
    %57 = vector.shape_cast %56 : vector<1x32x256xf32> to vector<32x256xf32>
    %58 = arith.addf %55, %57 : vector<32x256xf32>
    %cst_47 = arith.constant 0.000000e+00 : f32
    %59 = vector.broadcast %cst_47 : f32 to vector<32x256xf32>
    %60 = arith.maximumf %58, %59 : vector<32x256xf32>
    %c3 = arith.constant 3 : index
    %c0_48 = arith.constant 0 : index
    %c0_49 = arith.constant 0 : index
    %61 = vector.load %arg5[%c3, %c0_48, %c0_49] : memref<9x32x32xbf16, #tpu.memory_space<vmem>>, vector<1x32x32xbf16>
    %62 = vector.shape_cast %61 : vector<1x32x32xbf16> to vector<32x32xbf16>
    %63 = arith.truncf %60 : vector<32x256xf32> to vector<32x256xbf16>
    %cst_50 = arith.constant dense<0.000000e+00> : vector<32x256xf32>
    %64 = tpu.matmul %62, %63, %cst_50 {dimension_numbers = #tpu.dot_dimension_numbers<[1], [0], [0], [1], [0, 0, 1, 1], [], []>} : vector<32x32xbf16>, vector<32x256xbf16>, vector<32x256xf32> -> vector<32x256xf32>
    %c3_51 = arith.constant 3 : index
    %c0_52 = arith.constant 0 : index
    %c0_53 = arith.constant 0 : index
    %65 = vector.load %arg6[%c3_51, %c0_52, %c0_53] : memref<9x32x256xf32, #tpu.memory_space<vmem>>, vector<1x32x256xf32>
    %66 = vector.shape_cast %65 : vector<1x32x256xf32> to vector<32x256xf32>
    %67 = arith.addf %64, %66 : vector<32x256xf32>
    %cst_54 = arith.constant 0.000000e+00 : f32
    %68 = vector.broadcast %cst_54 : f32 to vector<32x256xf32>
    %69 = arith.maximumf %67, %68 : vector<32x256xf32>
    %c4 = arith.constant 4 : index
    %c0_55 = arith.constant 0 : index
    %c0_56 = arith.constant 0 : index
    %70 = vector.load %arg5[%c4, %c0_55, %c0_56] : memref<9x32x32xbf16, #tpu.memory_space<vmem>>, vector<1x32x32xbf16>
    %71 = vector.shape_cast %70 : vector<1x32x32xbf16> to vector<32x32xbf16>
    %72 = arith.truncf %69 : vector<32x256xf32> to vector<32x256xbf16>
    %cst_57 = arith.constant dense<0.000000e+00> : vector<32x256xf32>
    %73 = tpu.matmul %71, %72, %cst_57 {dimension_numbers = #tpu.dot_dimension_numbers<[1], [0], [0], [1], [0, 0, 1, 1], [], []>} : vector<32x32xbf16>, vector<32x256xbf16>, vector<32x256xf32> -> vector<32x256xf32>
    %c4_58 = arith.constant 4 : index
    %c0_59 = arith.constant 0 : index
    %c0_60 = arith.constant 0 : index
    %74 = vector.load %arg6[%c4_58, %c0_59, %c0_60] : memref<9x32x256xf32, #tpu.memory_space<vmem>>, vector<1x32x256xf32>
    %75 = vector.shape_cast %74 : vector<1x32x256xf32> to vector<32x256xf32>
    %76 = arith.addf %73, %75 : vector<32x256xf32>
    %cst_61 = arith.constant 0.000000e+00 : f32
    %77 = vector.broadcast %cst_61 : f32 to vector<32x256xf32>
    %78 = arith.maximumf %76, %77 : vector<32x256xf32>
    %c5 = arith.constant 5 : index
    %c0_62 = arith.constant 0 : index
    %c0_63 = arith.constant 0 : index
    %79 = vector.load %arg5[%c5, %c0_62, %c0_63] : memref<9x32x32xbf16, #tpu.memory_space<vmem>>, vector<1x32x32xbf16>
    %80 = vector.shape_cast %79 : vector<1x32x32xbf16> to vector<32x32xbf16>
    %81 = arith.truncf %78 : vector<32x256xf32> to vector<32x256xbf16>
    %cst_64 = arith.constant dense<0.000000e+00> : vector<32x256xf32>
    %82 = tpu.matmul %80, %81, %cst_64 {dimension_numbers = #tpu.dot_dimension_numbers<[1], [0], [0], [1], [0, 0, 1, 1], [], []>} : vector<32x32xbf16>, vector<32x256xbf16>, vector<32x256xf32> -> vector<32x256xf32>
    %c5_65 = arith.constant 5 : index
    %c0_66 = arith.constant 0 : index
    %c0_67 = arith.constant 0 : index
    %83 = vector.load %arg6[%c5_65, %c0_66, %c0_67] : memref<9x32x256xf32, #tpu.memory_space<vmem>>, vector<1x32x256xf32>
    %84 = vector.shape_cast %83 : vector<1x32x256xf32> to vector<32x256xf32>
    %85 = arith.addf %82, %84 : vector<32x256xf32>
    %cst_68 = arith.constant 0.000000e+00 : f32
    %86 = vector.broadcast %cst_68 : f32 to vector<32x256xf32>
    %87 = arith.maximumf %85, %86 : vector<32x256xf32>
    %c1_69 = arith.constant 1 : index
    %c0_70 = arith.constant 0 : index
    %c0_71 = arith.constant 0 : index
    %88 = vector.load %arg7[%c1_69, %c0_70, %c0_71] : memref<3x24x32xbf16, #tpu.memory_space<vmem>>, vector<1x24x32xbf16>
    %89 = vector.shape_cast %88 : vector<1x24x32xbf16> to vector<24x32xbf16>
    %90 = arith.truncf %87 : vector<32x256xf32> to vector<32x256xbf16>
    %cst_72 = arith.constant dense<0.000000e+00> : vector<24x256xf32>
    %91 = tpu.matmul %89, %90, %cst_72 {dimension_numbers = #tpu.dot_dimension_numbers<[1], [0], [0], [1], [0, 0, 1, 1], [], []>} : vector<24x32xbf16>, vector<32x256xbf16>, vector<24x256xf32> -> vector<24x256xf32>
    %c1_73 = arith.constant 1 : index
    %c0_74 = arith.constant 0 : index
    %c0_75 = arith.constant 0 : index
    %92 = vector.load %arg8[%c1_73, %c0_74, %c0_75] : memref<3x24x256xf32, #tpu.memory_space<vmem>>, vector<1x24x256xf32>
    %93 = vector.shape_cast %92 : vector<1x24x256xf32> to vector<24x256xf32>
    %94 = arith.addf %91, %93 : vector<24x256xf32>
    %95 = vector.extract_strided_slice %94 {offsets = [0, 0], sizes = [16, 256], strides = [1, 1]} : vector<24x256xf32> to vector<16x256xf32>
    %96 = arith.subf %49, %95 : vector<16x256xf32>
    %97 = arith.mulf %96, %0 : vector<16x256xf32>
    %98 = vector.extract_strided_slice %94 {offsets = [16, 0], sizes = [8, 256], strides = [1, 1]} : vector<24x256xf32> to vector<8x256xf32>
    %99 = arith.addf %51, %98 : vector<8x256xf32>
    %c2_76 = arith.constant 2 : index
    %c0_77 = arith.constant 0 : index
    %c0_78 = arith.constant 0 : index
    %100 = vector.load %arg3[%c2_76, %c0_77, %c0_78] : memref<3x32x16xbf16, #tpu.memory_space<vmem>>, vector<1x32x16xbf16>
    %101 = vector.shape_cast %100 : vector<1x32x16xbf16> to vector<32x16xbf16>
    %102 = arith.truncf %97 : vector<16x256xf32> to vector<16x256xbf16>
    %cst_79 = arith.constant dense<0.000000e+00> : vector<32x256xf32>
    %103 = tpu.matmul %101, %102, %cst_79 {dimension_numbers = #tpu.dot_dimension_numbers<[1], [0], [0], [1], [0, 0, 1, 1], [], []>} : vector<32x16xbf16>, vector<16x256xbf16>, vector<32x256xf32> -> vector<32x256xf32>
    %c2_80 = arith.constant 2 : index
    %c0_81 = arith.constant 0 : index
    %c0_82 = arith.constant 0 : index
    %104 = vector.load %arg4[%c2_80, %c0_81, %c0_82] : memref<3x32x256xf32, #tpu.memory_space<vmem>>, vector<1x32x256xf32>
    %105 = vector.shape_cast %104 : vector<1x32x256xf32> to vector<32x256xf32>
    %106 = arith.addf %103, %105 : vector<32x256xf32>
    %cst_83 = arith.constant 0.000000e+00 : f32
    %107 = vector.broadcast %cst_83 : f32 to vector<32x256xf32>
    %108 = arith.maximumf %106, %107 : vector<32x256xf32>
    %c6 = arith.constant 6 : index
    %c0_84 = arith.constant 0 : index
    %c0_85 = arith.constant 0 : index
    %109 = vector.load %arg5[%c6, %c0_84, %c0_85] : memref<9x32x32xbf16, #tpu.memory_space<vmem>>, vector<1x32x32xbf16>
    %110 = vector.shape_cast %109 : vector<1x32x32xbf16> to vector<32x32xbf16>
    %111 = arith.truncf %108 : vector<32x256xf32> to vector<32x256xbf16>
    %cst_86 = arith.constant dense<0.000000e+00> : vector<32x256xf32>
    %112 = tpu.matmul %110, %111, %cst_86 {dimension_numbers = #tpu.dot_dimension_numbers<[1], [0], [0], [1], [0, 0, 1, 1], [], []>} : vector<32x32xbf16>, vector<32x256xbf16>, vector<32x256xf32> -> vector<32x256xf32>
    %c6_87 = arith.constant 6 : index
    %c0_88 = arith.constant 0 : index
    %c0_89 = arith.constant 0 : index
    %113 = vector.load %arg6[%c6_87, %c0_88, %c0_89] : memref<9x32x256xf32, #tpu.memory_space<vmem>>, vector<1x32x256xf32>
    %114 = vector.shape_cast %113 : vector<1x32x256xf32> to vector<32x256xf32>
    %115 = arith.addf %112, %114 : vector<32x256xf32>
    %cst_90 = arith.constant 0.000000e+00 : f32
    %116 = vector.broadcast %cst_90 : f32 to vector<32x256xf32>
    %117 = arith.maximumf %115, %116 : vector<32x256xf32>
    %c7 = arith.constant 7 : index
    %c0_91 = arith.constant 0 : index
    %c0_92 = arith.constant 0 : index
    %118 = vector.load %arg5[%c7, %c0_91, %c0_92] : memref<9x32x32xbf16, #tpu.memory_space<vmem>>, vector<1x32x32xbf16>
    %119 = vector.shape_cast %118 : vector<1x32x32xbf16> to vector<32x32xbf16>
    %120 = arith.truncf %117 : vector<32x256xf32> to vector<32x256xbf16>
    %cst_93 = arith.constant dense<0.000000e+00> : vector<32x256xf32>
    %121 = tpu.matmul %119, %120, %cst_93 {dimension_numbers = #tpu.dot_dimension_numbers<[1], [0], [0], [1], [0, 0, 1, 1], [], []>} : vector<32x32xbf16>, vector<32x256xbf16>, vector<32x256xf32> -> vector<32x256xf32>
    %c7_94 = arith.constant 7 : index
    %c0_95 = arith.constant 0 : index
    %c0_96 = arith.constant 0 : index
    %122 = vector.load %arg6[%c7_94, %c0_95, %c0_96] : memref<9x32x256xf32, #tpu.memory_space<vmem>>, vector<1x32x256xf32>
    %123 = vector.shape_cast %122 : vector<1x32x256xf32> to vector<32x256xf32>
    %124 = arith.addf %121, %123 : vector<32x256xf32>
    %cst_97 = arith.constant 0.000000e+00 : f32
    %125 = vector.broadcast %cst_97 : f32 to vector<32x256xf32>
    %126 = arith.maximumf %124, %125 : vector<32x256xf32>
    %c8 = arith.constant 8 : index
    %c0_98 = arith.constant 0 : index
    %c0_99 = arith.constant 0 : index
    %127 = vector.load %arg5[%c8, %c0_98, %c0_99] : memref<9x32x32xbf16, #tpu.memory_space<vmem>>, vector<1x32x32xbf16>
    %128 = vector.shape_cast %127 : vector<1x32x32xbf16> to vector<32x32xbf16>
    %129 = arith.truncf %126 : vector<32x256xf32> to vector<32x256xbf16>
    %cst_100 = arith.constant dense<0.000000e+00> : vector<32x256xf32>
    %130 = tpu.matmul %128, %129, %cst_100 {dimension_numbers = #tpu.dot_dimension_numbers<[1], [0], [0], [1], [0, 0, 1, 1], [], []>} : vector<32x32xbf16>, vector<32x256xbf16>, vector<32x256xf32> -> vector<32x256xf32>
    %c8_101 = arith.constant 8 : index
    %c0_102 = arith.constant 0 : index
    %c0_103 = arith.constant 0 : index
    %131 = vector.load %arg6[%c8_101, %c0_102, %c0_103] : memref<9x32x256xf32, #tpu.memory_space<vmem>>, vector<1x32x256xf32>
    %132 = vector.shape_cast %131 : vector<1x32x256xf32> to vector<32x256xf32>
    %133 = arith.addf %130, %132 : vector<32x256xf32>
    %cst_104 = arith.constant 0.000000e+00 : f32
    %134 = vector.broadcast %cst_104 : f32 to vector<32x256xf32>
    %135 = arith.maximumf %133, %134 : vector<32x256xf32>
    %c2_105 = arith.constant 2 : index
    %c0_106 = arith.constant 0 : index
    %c0_107 = arith.constant 0 : index
    %136 = vector.load %arg7[%c2_105, %c0_106, %c0_107] : memref<3x24x32xbf16, #tpu.memory_space<vmem>>, vector<1x24x32xbf16>
    %137 = vector.shape_cast %136 : vector<1x24x32xbf16> to vector<24x32xbf16>
    %138 = arith.truncf %135 : vector<32x256xf32> to vector<32x256xbf16>
    %cst_108 = arith.constant dense<0.000000e+00> : vector<24x256xf32>
    %139 = tpu.matmul %137, %138, %cst_108 {dimension_numbers = #tpu.dot_dimension_numbers<[1], [0], [0], [1], [0, 0, 1, 1], [], []>} : vector<24x32xbf16>, vector<32x256xbf16>, vector<24x256xf32> -> vector<24x256xf32>
    %c2_109 = arith.constant 2 : index
    %c0_110 = arith.constant 0 : index
    %c0_111 = arith.constant 0 : index
    %140 = vector.load %arg8[%c2_109, %c0_110, %c0_111] : memref<3x24x256xf32, #tpu.memory_space<vmem>>, vector<1x24x256xf32>
    %141 = vector.shape_cast %140 : vector<1x24x256xf32> to vector<24x256xf32>
    %142 = arith.addf %139, %141 : vector<24x256xf32>
    %143 = vector.extract_strided_slice %142 {offsets = [16, 0], sizes = [8, 256], strides = [1, 1]} : vector<24x256xf32> to vector<8x256xf32>
    %144 = arith.addf %99, %143 : vector<8x256xf32>
    %c0_112 = arith.constant 0 : index
    %c0_113 = arith.constant 0 : index
    %145 = vector.load %arg9[%c0_112, %c0_113] : memref<8x256xf32, #tpu.memory_space<vmem>>, vector<8x256xf32>
    tpu.vector_store %arg9[%c0_112, %c0_113], %144 {strides = array<i32>} : memref<8x256xf32, #tpu.memory_space<vmem>>, vector<8x256xf32>,
    return
  }
  func.func @transform_0(%arg0: i32) -> (i32, i32) {
    %c0_i32 = arith.constant 0 : i32
    %c0_i32_0 = arith.constant 0 : i32
    return %c0_i32, %arg0 : i32, i32
  }
  func.func @transform_1(%arg0: i32) -> (i32, i32) {
    %c0_i32 = arith.constant 0 : i32
    %c0_i32_0 = arith.constant 0 : i32
    return %c0_i32, %arg0 : i32, i32
  }
  func.func @transform_2(%arg0: i32) -> (i32, i32, i32) {
    %c0_i32 = arith.constant 0 : i32
    %c0_i32_0 = arith.constant 0 : i32
    %c0_i32_1 = arith.constant 0 : i32
    %c0_i32_2 = arith.constant 0 : i32
    return %c0_i32, %c0_i32_0, %c0_i32_1 : i32, i32, i32
  }
  func.func @transform_3(%arg0: i32) -> (i32, i32, i32) {
    %c0_i32 = arith.constant 0 : i32
    %c0_i32_0 = arith.constant 0 : i32
    %c0_i32_1 = arith.constant 0 : i32
    %c0_i32_2 = arith.constant 0 : i32
    return %c0_i32, %c0_i32_0, %c0_i32_1 : i32, i32, i32
  }
  func.func @transform_4(%arg0: i32) -> (i32, i32, i32) {
    %c0_i32 = arith.constant 0 : i32
    %c0_i32_0 = arith.constant 0 : i32
    %c0_i32_1 = arith.constant 0 : i32
    %c0_i32_2 = arith.constant 0 : i32
    return %c0_i32, %c0_i32_0, %c0_i32_1 : i32, i32, i32
  }
  func.func @transform_5(%arg0: i32) -> (i32, i32, i32) {
    %c0_i32 = arith.constant 0 : i32
    %c0_i32_0 = arith.constant 0 : i32
    %c0_i32_1 = arith.constant 0 : i32
    %c0_i32_2 = arith.constant 0 : i32
    return %c0_i32, %c0_i32_0, %c0_i32_1 : i32, i32, i32
  }
  func.func @transform_6(%arg0: i32) -> (i32, i32, i32) {
    %c0_i32 = arith.constant 0 : i32
    %c0_i32_0 = arith.constant 0 : i32
    %c0_i32_1 = arith.constant 0 : i32
    %c0_i32_2 = arith.constant 0 : i32
    return %c0_i32, %c0_i32_0, %c0_i32_1 : i32, i32, i32
  }
  func.func @transform_7(%arg0: i32) -> (i32, i32, i32) {
    %c0_i32 = arith.constant 0 : i32
    %c0_i32_0 = arith.constant 0 : i32
    %c0_i32_1 = arith.constant 0 : i32
    %c0_i32_2 = arith.constant 0 : i32
    return %c0_i32, %c0_i32_0, %c0_i32_1 : i32, i32, i32
  }
  func.func @transform_8(%arg0: i32) -> (i32, i32) {
    %c0_i32 = arith.constant 0 : i32
    %c0_i32_0 = arith.constant 0 : i32
    return %c0_i32, %arg0 : i32, i32
  }
}

</mosaic_0001>

<llo_original>
// kernel: nbeats_prediction_forward.1
$region0: #{nbeats_prediction_forward.1}
  #allocation0 [shape = 'u32[]', space=smem, size = 0x4, offset = 0x4, fixed_abs, tag = 'smem constant byte address 0x4 - core index']
  #allocation1 [shape = 'u32[72,128]{1,0:T(1,128)}', space=vmem, size = 0x9000, scoped, tag = 'internal scratch']
  %s0 = inlined_call_operand.vmem [shape: f32[16,512], index: 0, kind: input, shape index: {}]
  %s1 = inlined_call_operand.vmem [shape: f32[16,512], index: 1, kind: input, shape index: {}]
  %s2 = inlined_call_operand.vmem [shape: bf16[3,32,16], index: 2, kind: input, shape index: {}]
  %s3 = inlined_call_operand.vmem [shape: f32[3,32,256], index: 3, kind: input, shape index: {}]
  %s4 = inlined_call_operand.vmem [shape: bf16[9,32,32], index: 4, kind: input, shape index: {}]
  %s5 = inlined_call_operand.vmem [shape: f32[9,32,256], index: 5, kind: input, shape index: {}]
  %s6 = inlined_call_operand.vmem [shape: bf16[3,24,32], index: 6, kind: input, shape index: {}]
  %s7 = inlined_call_operand.vmem [shape: f32[3,24,256], index: 7, kind: input, shape index: {}]
  %s8 = inlined_call_operand.vmem [shape: f32[8,512], index: 8, kind: output, shape index: {}]
  %s9 = sld [smem:[#allocation0]]
  $region111: #{nbeats_prediction_forward.1} parent=0
    _
  %s11 = ssub.s32 1, %s9
  %s12 = scalar_select 0, %s11, %s9
  $region1: #{nbeats_prediction_forward.1} parent=0
    #allocation2 [shape = 'u8[32768]{0}', space=vmem, size = 0x8000, scoped, tag = 'input window, operand 0']
    #allocation3 [shape = 'u8[32768]{0}', space=vmem, size = 0x8000, scoped, tag = 'input window, operand 1']
    loop: start=0, step=1, limit=4
    $region2: #{nbeats_prediction_forward.1} parent=1 // loop_pre_header
      _
    $region3: #{nbeats_prediction_forward.1} parent=1 // loop_header
      %s14 = sphi 0, %s18
      %p15 = scmp.ge.s32.totalorder %s14, 4
      %s24 = sphi 0, %s26
      %s27 = sphi 0, %s24
      %s28 = sphi 0, %s27
      %s44 = sphi 0, %s28
      %s50 = sphi 0, %s52
      %s53 = sphi 0, %s50
      %s54 = sphi 0, %s53
      %s70 = sphi 0, %s54
      %s74 = sphi 0, %s74
      %s76 = sphi 0, %s74
      %s77 = sphi 0, %s76
      %s91 = sphi 0, %s77
      %s95 = sphi 0, %s95
      %s97 = sphi 0, %s95
      %s98 = sphi 0, %s97
      %s112 = sphi 0, %s98
      %s116 = sphi 0, %s116
      %s118 = sphi 0, %s116
      %s119 = sphi 0, %s118
      %s133 = sphi 0, %s119
      %s137 = sphi 0, %s137
      %s139 = sphi 0, %s137
      %s140 = sphi 0, %s139
      %s154 = sphi 0, %s140
      %s158 = sphi 0, %s158
      %s160 = sphi 0, %s158
      %s161 = sphi 0, %s160
      %s175 = sphi 0, %s161
      %s179 = sphi 0, %s179
      %s181 = sphi 0, %s179
      %s182 = sphi 0, %s181
      %s196 = sphi 0, %s182
      %s202 = sphi 0, %s204
      %s205 = sphi 0, %s202
      %s206 = sphi 0, %s205
      %s222 = sphi 0, %s206
    $region4: #{nbeats_prediction_forward.1} parent=1 // loop_header_branch
      %17 = sbr.rel (%p15) target = $region8
    $region5: #{nbeats_prediction_forward.1} parent=1 // loop_body
      %s19 = ssub.s32 %s14, 1
      %s20 = ssub.s32 %s14, 2
      %s21 = sadd.s32 %s14, 1
      %s22 = ssub.s32 %s14, %s21
      %p23 = scmp.eq.s32.totalorder %s22, 0
      %s25 = sadd.s32 %s24, 1
      %s26 = scalar_select %p23, %s24, %s25
      %p29 = pneg %p23
      %p30 = scmp.eq.s32.totalorder %s14, 1
      %p31 = por %p29, %p30
      %p32 = scmp.ne.s32.totalorder %s24, %s27
      %p33 = scmp.eq.s32.totalorder %s14, 0
      %p34 = por %p32, %p33
      %p35 = scmp.ne.s32.totalorder %s24, %s27
      %p36 = scmp.eq.s32.totalorder %s19, 1
      %p37 = por %p35, %p36
      %p38 = scmp.ne.s32.totalorder %s27, %s28
      %p39 = scmp.eq.s32.totalorder %s19, 0
      %p40 = por %p38, %p39
      %p41 = scmp.ne.s32.totalorder %s27, %s28
      %p42 = scmp.eq.s32.totalorder %s20, 1
      %p43 = por %p41, %p42
      %p45 = scmp.ne.s32.totalorder %s28, %s44
      %p46 = scmp.eq.s32.totalorder %s20, 0
      %p47 = por %p45, %p46
      %s48 = ssub.s32 %s14, %s21
      %p49 = scmp.eq.s32.totalorder %s48, 0
      %s51 = sadd.s32 %s50, 1
      %s52 = scalar_select %p49, %s50, %s51
      %p55 = pneg %p49
      %p56 = scmp.eq.s32.totalorder %s14, 1
      %p57 = por %p55, %p56
      %p58 = scmp.ne.s32.totalorder %s50, %s53
      %p59 = scmp.eq.s32.totalorder %s14, 0
      %p60 = por %p58, %p59
      %p61 = scmp.ne.s32.totalorder %s50, %s53
      %p62 = scmp.eq.s32.totalorder %s19, 1
      %p63 = por %p61, %p62
      %p64 = scmp.ne.s32.totalorder %s53, %s54
      %p65 = scmp.eq.s32.totalorder %s19, 0
      %p66 = por %p64, %p65
      %p67 = scmp.ne.s32.totalorder %s53, %s54
      %p68 = scmp.eq.s32.totalorder %s20, 1
      %p69 = por %p67, %p68
      %p71 = scmp.ne.s32.totalorder %s54, %s70
      %p72 = scmp.eq.s32.totalorder %s20, 0
      %p73 = por %p71, %p72
      %s75 = sadd.s32 %s74, 1
      %p78 = scmp.eq.s32.totalorder %s14, 1
      %p79 = scmp.ne.s32.totalorder %s74, %s76
      %p80 = scmp.eq.s32.totalorder %s14, 0
      %p81 = por %p79, %p80
      %p82 = scmp.ne.s32.totalorder %s74, %s76
      %p83 = scmp.eq.s32.totalorder %s19, 1
      %p84 = por %p82, %p83
      %p85 = scmp.ne.s32.totalorder %s76, %s77
      %p86 = scmp.eq.s32.totalorder %s19, 0
      %p87 = por %p85, %p86
      %p88 = scmp.ne.s32.totalorder %s76, %s77
      %p89 = scmp.eq.s32.totalorder %s20, 1
      %p90 = por %p88, %p89
      %p92 = scmp.ne.s32.totalorder %s77, %s91
      %p93 = scmp.eq.s32.totalorder %s20, 0
      %p94 = por %p92, %p93
      %s96 = sadd.s32 %s95, 1
      %p99 = scmp.eq.s32.totalorder %s14, 1
      %p100 = scmp.ne.s32.totalorder %s95, %s97
      %p101 = scmp.eq.s32.totalorder %s14, 0
      %p102 = por %p100, %p101
      %p103 = scmp.ne.s32.totalorder %s95, %s97
      %p104 = scmp.eq.s32.totalorder %s19, 1
      %p105 = por %p103, %p104
      %p106 = scmp.ne.s32.totalorder %s97, %s98
      %p107 = scmp.eq.s32.totalorder %s19, 0
      %p108 = por %p106, %p107
      %p109 = scmp.ne.s32.totalorder %s97, %s98
      %p110 = scmp.eq.s32.totalorder %s20, 1
      %p111 = por %p109, %p110
      %p113 = scmp.ne.s32.totalorder %s98, %s112
      %p114 = scmp.eq.s32.totalorder %s20, 0
      %p115 = por %p113, %p114
      %s117 = sadd.s32 %s116, 1
      %p120 = scmp.eq.s32.totalorder %s14, 1
      %p121 = scmp.ne.s32.totalorder %s116, %s118
      %p122 = scmp.eq.s32.totalorder %s14, 0
      %p123 = por %p121, %p122
      %p124 = scmp.ne.s32.totalorder %s116, %s118
      %p125 = scmp.eq.s32.totalorder %s19, 1
      %p126 = por %p124, %p125
      %p127 = scmp.ne.s32.totalorder %s118, %s119
      %p128 = scmp.eq.s32.totalorder %s19, 0
      %p129 = por %p127, %p128
      %p130 = scmp.ne.s32.totalorder %s118, %s119
      %p131 = scmp.eq.s32.totalorder %s20, 1
      %p132 = por %p130, %p131
      %p134 = scmp.ne.s32.totalorder %s119, %s133
      %p135 = scmp.eq.s32.totalorder %s20, 0
      %p136 = por %p134, %p135
      %s138 = sadd.s32 %s137, 1
      %p141 = scmp.eq.s32.totalorder %s14, 1
      %p142 = scmp.ne.s32.totalorder %s137, %s139
      %p143 = scmp.eq.s32.totalorder %s14, 0
      %p144 = por %p142, %p143
      %p145 = scmp.ne.s32.totalorder %s137, %s139
      %p146 = scmp.eq.s32.totalorder %s19, 1
      %p147 = por %p145, %p146
      %p148 = scmp.ne.s32.totalorder %s139, %s140
      %p149 = scmp.eq.s32.totalorder %s19, 0
      %p150 = por %p148, %p149
      %p151 = scmp.ne.s32.totalorder %s139, %s140
      %p152 = scmp.eq.s32.totalorder %s20, 1
      %p153 = por %p151, %p152
      %p155 = scmp.ne.s32.totalorder %s140, %s154
      %p156 = scmp.eq.s32.totalorder %s20, 0
      %p157 = por %p155, %p156
      %s159 = sadd.s32 %s158, 1
      %p162 = scmp.eq.s32.totalorder %s14, 1
      %p163 = scmp.ne.s32.totalorder %s158, %s160
      %p164 = scmp.eq.s32.totalorder %s14, 0
      %p165 = por %p163, %p164
      %p166 = scmp.ne.s32.totalorder %s158, %s160
      %p167 = scmp.eq.s32.totalorder %s19, 1
      %p168 = por %p166, %p167
      %p169 = scmp.ne.s32.totalorder %s160, %s161
      %p170 = scmp.eq.s32.totalorder %s19, 0
      %p171 = por %p169, %p170
      %p172 = scmp.ne.s32.totalorder %s160, %s161
      %p173 = scmp.eq.s32.totalorder %s20, 1
      %p174 = por %p172, %p173
      %p176 = scmp.ne.s32.totalorder %s161, %s175
      %p177 = scmp.eq.s32.totalorder %s20, 0
      %p178 = por %p176, %p177
      %s180 = sadd.s32 %s179, 1
      %p183 = scmp.eq.s32.totalorder %s14, 1
      %p184 = scmp.ne.s32.totalorder %s179, %s181
      %p185 = scmp.eq.s32.totalorder %s14, 0
      %p186 = por %p184, %p185
      %p187 = scmp.ne.s32.totalorder %s179, %s181
      %p188 = scmp.eq.s32.totalorder %s19, 1
      %p189 = por %p187, %p188
      %p190 = scmp.ne.s32.totalorder %s181, %s182
      %p191 = scmp.eq.s32.totalorder %s19, 0
      %p192 = por %p190, %p191
      %p193 = scmp.ne.s32.totalorder %s181, %s182
      %p194 = scmp.eq.s32.totalorder %s20, 1
      %p195 = por %p193, %p194
      %p197 = scmp.ne.s32.totalorder %s182, %s196
      %p198 = scmp.eq.s32.totalorder %s20, 0
      %p199 = por %p197, %p198
      %s200 = ssub.s32 %s14, %s21
      %p201 = scmp.eq.s32.totalorder %s200, 0
      %s203 = sadd.s32 %s202, 1
      %s204 = scalar_select %p201, %s202, %s203
      %p207 = pneg %p201
      %p208 = scmp.eq.s32.totalorder %s14, 1
      %p209 = por %p207, %p208
      %p210 = scmp.ne.s32.totalorder %s202, %s205
      %p211 = scmp.eq.s32.totalorder %s14, 0
      %p212 = por %p210, %p211
      %p213 = scmp.ne.s32.totalorder %s202, %s205
      %p214 = scmp.eq.s32.totalorder %s19, 1
      %p215 = por %p213, %p214
      %p216 = scmp.ne.s32.totalorder %s205, %s206
      %p217 = scmp.eq.s32.totalorder %s19, 0
      %p218 = por %p216, %p217
      %p219 = scmp.ne.s32.totalorder %s205, %s206
      %p220 = scmp.eq.s32.totalorder %s20, 1
      %p221 = por %p219, %p220
      %p223 = scmp.ne.s32.totalorder %s206, %s222
      %p224 = scmp.eq.s32.totalorder %s20, 0
      %p225 = por %p223, %p224
      %p226 = scmp.le.s32.totalorder 1, %s14
      %p227 = scmp.lt.s32.totalorder %s14, 3
      %p228 = pnand %p226, %p227
      %p229 = pneg %p228
      // Predicated region
      $region9: #{nbeats_prediction_forward.1} parent=5 // pred_check
        _
      $region10: #{nbeats_prediction_forward.1} parent=5 // pred_check_branch
        %231 = sbr.rel (%p228) target = $region12
      $region11: #{nbeats_prediction_forward.1} parent=5 // pred_region
        %s232 = ssub.s32 %s14, 1
        // Predicated region
        $region13: #{nbeats_prediction_forward.1} parent=11 // pred_check
          %p233 = pneg %p87
        $region14: #{nbeats_prediction_forward.1} parent=11 // pred_check_branch
          %235 = sbr.rel (%p233) target = $region16
        $region15: #{nbeats_prediction_forward.1} parent=11 // pred_region
          _
        $region16: #{nbeats_prediction_forward.1} parent=11 // pred_fallthru
          _
        // Predicated region
        $region17: #{nbeats_prediction_forward.1} parent=11 // pred_check
          %p236 = pneg %p108
        $region18: #{nbeats_prediction_forward.1} parent=11 // pred_check_branch
          %238 = sbr.rel (%p236) target = $region20
        $region19: #{nbeats_prediction_forward.1} parent=11 // pred_region
          _
        $region20: #{nbeats_prediction_forward.1} parent=11 // pred_fallthru
          _
        // Predicated region
        $region21: #{nbeats_prediction_forward.1} parent=11 // pred_check
          %p239 = pneg %p129
        $region22: #{nbeats_prediction_forward.1} parent=11 // pred_check_branch
          %241 = sbr.rel (%p239) target = $region24
        $region23: #{nbeats_prediction_forward.1} parent=11 // pred_region
          _
        $region24: #{nbeats_prediction_forward.1} parent=11 // pred_fallthru
          _
        // Predicated region
        $region25: #{nbeats_prediction_forward.1} parent=11 // pred_check
          %p242 = pneg %p150
        $region26: #{nbeats_prediction_forward.1} parent=11 // pred_check_branch
          %244 = sbr.rel (%p242) target = $region28
        $region27: #{nbeats_prediction_forward.1} parent=11 // pred_region
          _
        $region28: #{nbeats_prediction_forward.1} parent=11 // pred_fallthru
          _
        // Predicated region
        $region29: #{nbeats_prediction_forward.1} parent=11 // pred_check
          %p245 = pneg %p171
        $region30: #{nbeats_prediction_forward.1} parent=11 // pred_check_branch
          %247 = sbr.rel (%p245) target = $region32
        $region31: #{nbeats_prediction_forward.1} parent=11 // pred_region
          _
        $region32: #{nbeats_prediction_forward.1} parent=11 // pred_fallthru
          _
        // Predicated region
        $region33: #{nbeats_prediction_forward.1} parent=11 // pred_check
          %p248 = pneg %p192
        $region34: #{nbeats_prediction_forward.1} parent=11 // pred_check_branch
          %250 = sbr.rel (%p248) target = $region36
        $region35: #{nbeats_prediction_forward.1} parent=11 // pred_region
          _
        $region36: #{nbeats_prediction_forward.1} parent=11 // pred_fallthru
          _
      $region12: #{nbeats_prediction_forward.1} parent=5 // pred_fallthru
        _
      %p251 = scmp.lt.s32.totalorder %s14, 2
      // Predicated region
      $region37: #{nbeats_prediction_forward.1} parent=5 // pred_check
        %p252 = pneg %p251
      $region38: #{nbeats_prediction_forward.1} parent=5 // pred_check_branch
        %254 = sbr.rel (%p252) target = $region40
      $region39: #{nbeats_prediction_forward.1} parent=5 // pred_region
        // Predicated region
        $region41: #{nbeats_prediction_forward.1} parent=39 // pred_check
          %p255 = pneg %p34
        $region42: #{nbeats_prediction_forward.1} parent=39 // pred_check_branch
          %257 = sbr.rel (%p255) target = $region44
        $region43: #{nbeats_prediction_forward.1} parent=39 // pred_region
          %s258 = sand.u32 %s24, 1
          %s259 = sand.u32 %s24, 1
          %s260 = smul.addr %s259, 32
          %s261 = scalar_lea.vmem [#allocation2], %s260
          %s262 = smul.u32 2, %s14
          %s263 = smul.addr %s262, 8
          %s264 = scalar_lea.vmem %s0, %s263
          // Predicated region
          $region45: #{nbeats_prediction_forward.1} parent=43 // pred_check
            _
          $region46: #{nbeats_prediction_forward.1} parent=43 // pred_check_branch
            %266 = sbr.rel (0) target = $region48
          $region47: #{nbeats_prediction_forward.1} parent=43 // pred_region
            // Predicated region
            $region49: #{nbeats_prediction_forward.1} parent=47 // pred_check
              _
            $region50: #{nbeats_prediction_forward.1} parent=47 // pred_check_branch
              %268 = sbr.rel (0) target = $region52
            $region51: #{nbeats_prediction_forward.1} parent=47 // pred_region
              loop: start=0, step=1, limit=1
              $region53: #{nbeats_prediction_forward.1} parent=51 // loop_pre_header
                _
              $region54: #{nbeats_prediction_forward.1} parent=51 // loop_header
                %s270 = sphi 0, %s274
                %p271 = scmp.ge.s32.totalorder %s270, 1
                %s275 = sphi %s264, %s264
                %s276 = sphi %s261, %s261
              $region55: #{nbeats_prediction_forward.1} parent=51 // loop_header_branch
                %273 = sbr.rel (%p271) target = $region59
              $region56: #{nbeats_prediction_forward.1} parent=51 // loop_body
                %v277 = vld [vmem:[%s275] sm:$0xff]
                %278 = vst [vmem:[%s276] sm:$0xff] %v277
                %v279 = vld [vmem:[%s275 + $0x8] sm:$0xff]
                %280 = vst [vmem:[%s276 + $0x8] sm:$0xff] %v279
                %v281 = vld [vmem:[%s275 + $0x20] sm:$0xff]
                %282 = vst [vmem:[%s276 + $0x10] sm:$0xff] %v281
                %v283 = vld [vmem:[%s275 + $0x28] sm:$0xff]
                %284 = vst [vmem:[%s276 + $0x18] sm:$0xff] %v283
              $region57: #{nbeats_prediction_forward.1} parent=51 // loop_footer
                %s274 = sadd.s32 1, %s270
              $region58: #{nbeats_prediction_forward.1} parent=51 // loop_footer_branch
                %269 = sbr.rel target = $region54
              $region59: #{nbeats_prediction_forward.1} parent=51 // loop_exit
                _
            $region52: #{nbeats_prediction_forward.1} parent=47 // pred_fallthru
              _
            // Predicated region
            $region60: #{nbeats_prediction_forward.1} parent=47 // pred_check
              _
            $region61: #{nbeats_prediction_forward.1} parent=47 // pred_check_branch
              %286 = sbr.rel target = $region63
            $region62: #{nbeats_prediction_forward.1} parent=47 // pred_region
              _
            $region63: #{nbeats_prediction_forward.1} parent=47 // pred_fallthru
              _
          $region48: #{nbeats_prediction_forward.1} parent=43 // pred_fallthru
            _
          %287 = vnop
        $region44: #{nbeats_prediction_forward.1} parent=39 // pred_fallthru
          _
        // Predicated region
        $region64: #{nbeats_prediction_forward.1} parent=39 // pred_check
          %p288 = pneg %p60
        $region65: #{nbeats_prediction_forward.1} parent=39 // pred_check_branch
          %290 = sbr.rel (%p288) target = $region67
        $region66: #{nbeats_prediction_forward.1} parent=39 // pred_region
          %s291 = sand.u32 %s50, 1
          %s292 = sand.u32 %s50, 1
          %s293 = smul.addr %s292, 32
          %s294 = scalar_lea.vmem [#allocation3], %s293
          %s295 = smul.u32 2, %s14
          %s296 = smul.addr %s295, 8
          %s297 = scalar_lea.vmem %s1, %s296
          // Predicated region
          $region68: #{nbeats_prediction_forward.1} parent=66 // pred_check
            _
          $region69: #{nbeats_prediction_forward.1} parent=66 // pred_check_branch
            %299 = sbr.rel (0) target = $region71
          $region70: #{nbeats_prediction_forward.1} parent=66 // pred_region
            // Predicated region
            $region72: #{nbeats_prediction_forward.1} parent=70 // pred_check
              _
            $region73: #{nbeats_prediction_forward.1} parent=70 // pred_check_branch
              %301 = sbr.rel (0) target = $region75
            $region74: #{nbeats_prediction_forward.1} parent=70 // pred_region
              loop: start=0, step=1, limit=1
              $region76: #{nbeats_prediction_forward.1} parent=74 // loop_pre_header
                _
              $region77: #{nbeats_prediction_forward.1} parent=74 // loop_header
                %s303 = sphi 0, %s307
                %p304 = scmp.ge.s32.totalorder %s303, 1
                %s308 = sphi %s297, %s297
                %s309 = sphi %s294, %s294
              $region78: #{nbeats_prediction_forward.1} parent=74 // loop_header_branch
                %306 = sbr.rel (%p304) target = $region82
              $region79: #{nbeats_prediction_forward.1} parent=74 // loop_body
                %v310 = vld [vmem:[%s308] sm:$0xff]
                %311 = vst [vmem:[%s309] sm:$0xff] %v310
                %v312 = vld [vmem:[%s308 + $0x8] sm:$0xff]
                %313 = vst [vmem:[%s309 + $0x8] sm:$0xff] %v312
                %v314 = vld [vmem:[%s308 + $0x20] sm:$0xff]
                %315 = vst [vmem:[%s309 + $0x10] sm:$0xff] %v314
                %v316 = vld [vmem:[%s308 + $0x28] sm:$0xff]
                %317 = vst [vmem:[%s309 + $0x18] sm:$0xff] %v316
              $region80: #{nbeats_prediction_forward.1} parent=74 // loop_footer
                %s307 = sadd.s32 1, %s303
              $region81: #{nbeats_prediction_forward.1} parent=74 // loop_footer_branch
                %302 = sbr.rel target = $region77
              $region82: #{nbeats_prediction_forward.1} parent=74 // loop_exit
                _
            $region75: #{nbeats_prediction_forward.1} parent=70 // pred_fallthru
              _
            // Predicated region
            $region83: #{nbeats_prediction_forward.1} parent=70 // pred_check
              _
            $region84: #{nbeats_prediction_forward.1} parent=70 // pred_check_branch
              %319 = sbr.rel target = $region86
            $region85: #{nbeats_prediction_forward.1} parent=70 // pred_region
              _
            $region86: #{nbeats_prediction_forward.1} parent=70 // pred_fallthru
              _
          $region71: #{nbeats_prediction_forward.1} parent=66 // pred_fallthru
            _
          %320 = vnop
        $region67: #{nbeats_prediction_forward.1} parent=39 // pred_fallthru
          _
      $region40: #{nbeats_prediction_forward.1} parent=5 // pred_fallthru
        _
      %p321 = scmp.le.s32.totalorder 1, %s14
      %p322 = scmp.lt.s32.totalorder %s14, 3
      %p323 = pnand %p321, %p322
      %p324 = pneg %p323
      // Predicated region
      $region87: #{nbeats_prediction_forward.1} parent=5 // pred_check
        _
      $region88: #{nbeats_prediction_forward.1} parent=5 // pred_check_branch
        %326 = sbr.rel (%p323) target = $region90
      $region89: #{nbeats_prediction_forward.1} parent=5 // pred_region
        %s327 = ssub.s32 %s14, 1
        %s328 = sand.u32 %s27, 1
        %s329 = sand.u32 %s27, 1
        %s330 = smul.addr %s329, 32
        %s331 = scalar_lea.vmem [#allocation2], %s330
        // Predicated region
        $region91: #{nbeats_prediction_forward.1} parent=89 // pred_check
          %p332 = pneg %p40
        $region92: #{nbeats_prediction_forward.1} parent=89 // pred_check_branch
          %334 = sbr.rel (%p332) target = $region94
        $region93: #{nbeats_prediction_forward.1} parent=89 // pred_region
          _
        $region94: #{nbeats_prediction_forward.1} parent=89 // pred_fallthru
          _
        %s335 = sand.u32 %s53, 1
        %s336 = sand.u32 %s53, 1
        %s337 = smul.addr %s336, 32
        %s338 = scalar_lea.vmem [#allocation3], %s337
        // Predicated region
        $region95: #{nbeats_prediction_forward.1} parent=89 // pred_check
          %p339 = pneg %p66
        $region96: #{nbeats_prediction_forward.1} parent=89 // pred_check_branch
          %341 = sbr.rel (%p339) target = $region98
        $region97: #{nbeats_prediction_forward.1} parent=89 // pred_region
          _
        $region98: #{nbeats_prediction_forward.1} parent=89 // pred_fallthru
          _
        %s342 = sand.u32 %s27, 1
        %s343 = sand.u32 %s27, 1
        %s344 = smul.addr %s343, 32
        %s345 = scalar_lea.vmem [#allocation2], %s344
        %p346 = pneg %p40
        %p347 = pneg %p37
        %s348 = sand.u32 %s53, 1
        %s349 = sand.u32 %s53, 1
        %s350 = smul.addr %s349, 32
        %s351 = scalar_lea.vmem [#allocation3], %s350
        %p352 = pneg %p66
        %p353 = pneg %p63
        %p354 = pneg %p87
        %p355 = pneg %p84
        %p356 = pneg %p108
        %p357 = pneg %p105
        %p358 = pneg %p129
        %p359 = pneg %p126
        %p360 = pneg %p150
        %p361 = pneg %p147
        %p362 = pneg %p171
        %p363 = pneg %p168
        %p364 = pneg %p192
        %p365 = pneg %p189
        %p366 = pneg %p218
        %p367 = pneg %p215
        %s368 = smul.u32 2, %s19
        %p369 = scmp.lt.s32.totalorder %s368, 3
        %s370 = scalar_select %p369, %s368, 3
        %s371 = smul.addr %s370, 8
        %s372 = scalar_lea.vmem %s8, %s371
        %s373 = smul.u32 2, %s19
        %s374 = smul.u32 2, %s19
        %s375 = smul.u32 2, %s19
        %p376 = scmp.lt.s32.totalorder %s375, 3
        %s377 = scalar_select %p376, %s375, 3
        %s378 = smul.addr %s377, 8
        %s379 = scalar_lea.vmem %s8, %s378
        %s380 = smul.u32 2, %s19
        %v382 = vld [vmem:[%s338] sm:$0xff]
        %v383 = vld [vmem:[%s338 + $0x8] sm:$0xff]
        %v384 = vld [vmem:[%s338 + $0x10] sm:$0xff]
        %v385 = vld [vmem:[%s338 + $0x18] sm:$0xff]
        %v386 = vld [vmem:[%s331] sm:$0xff]
        %v387 = vld [vmem:[%s331 + $0x8] sm:$0xff]
        %v388 = vld [vmem:[%s331 + $0x10] sm:$0xff]
        %v389 = vld [vmem:[%s331 + $0x18] sm:$0xff]
        %v390 = vmul.f32 %v386, %v382
        %v391 = vmul.f32 %v387, %v383
        %v392 = vmul.f32 %v388, %v384
        %v393 = vmul.f32 %v389, %v385
        %v394 = vld [vmem:[%s2] sm:$0xf]
        %v395 = vld [vmem:[%s2 + $0x4] sm:$0xf]
        %v396 = vld [vmem:[%s2 + $0x8] sm:$0xf]
        %v397 = vld [vmem:[%s2 + $0xc] sm:$0xf]
        %v398 = vpack.c.bf16 %v392, %v390
        %v399 = vpack.c.bf16 %v393, %v391
        %v400 = vld [vmem:[%s3] sm:$0xff]
        %v401 = vld [vmem:[%s3 + $0x8] sm:$0xff]
        %v402 = vld [vmem:[%s3 + $0x10] sm:$0xff]
        %v403 = vld [vmem:[%s3 + $0x18] sm:$0xff]
        %v404 = vld [vmem:[%s3 + $0x20] sm:$0xff]
        %v405 = vld [vmem:[%s3 + $0x28] sm:$0xff]
        %v406 = vld [vmem:[%s3 + $0x30] sm:$0xff]
        %v407 = vld [vmem:[%s3 + $0x38] sm:$0xff]
        %v412 = vunpack.c.l.b16 %v394
        %v413 = vunpack.c.l.b16 %v395
        %v414 = vunpack.c.l.b16 %v396
        %v415 = vunpack.c.l.b16 %v397
        %v416 = vpack.c.b16 %v413, %v412
        %v417 = vpack.c.b16 %v415, %v414
        %vm418 = vcmask 130048
        %v420 = vsel %vm418, %v416, 0
        %v423 = vsel %vm418, %v417, 0
        %425 = vmatpush.bf16.msra.mxu0 0
        %426 = vmatpush.bf16.msra.mxu0 0
        %427 = vmatpush.bf16.msra.mxu0 0
        %428 = vmatpush.bf16.msra.mxu0 0
        %429 = vmatpush.bf16.msra.mxu0 0
        %430 = vmatpush.bf16.msra.mxu0 0
        %431 = vmatpush.bf16.msra.mxu0 0
        %432 = vmatpush.bf16.msra.mxu0 %v398
        %433 = vmatmul.bf16.gmra.mxu0 %v420
        %v434 = vpop.f32.mrf.mxu0
        %v435 = vadd.f32 %v400, %v434
        %v436 = vpop.f32.mrf.mxu0
        %v437 = vadd.f32 %v402, %v436
        %438 = vmatmul.bf16.gmra.mxu0 %v423
        %v439 = vpop.f32.mrf.mxu0
        %v440 = vadd.f32 %v404, %v439
        %v441 = vpop.f32.mrf.mxu0
        %v442 = vadd.f32 %v406, %v441
        %443 = vdwg.mxu0
        %444 = vmatpush.bf16.msra.mxu0 0
        %445 = vmatpush.bf16.msra.mxu0 0
        %446 = vmatpush.bf16.msra.mxu0 0
        %447 = vmatpush.bf16.msra.mxu0 0
        %448 = vmatpush.bf16.msra.mxu0 0
        %449 = vmatpush.bf16.msra.mxu0 0
        %450 = vmatpush.bf16.msra.mxu0 0
        %451 = vmatpush.bf16.msra.mxu0 %v399
        %452 = vmatmul.bf16.gmra.mxu0 %v420
        %v453 = vpop.f32.mrf.mxu0
        %v454 = vadd.f32 %v401, %v453
        %v455 = vpop.f32.mrf.mxu0
        %v456 = vadd.f32 %v403, %v455
        %457 = vmatmul.bf16.gmra.mxu0 %v423
        %v458 = vpop.f32.mrf.mxu0
        %v459 = vadd.f32 %v405, %v458
        %v460 = vpop.f32.mrf.mxu0
        %v461 = vadd.f32 %v407, %v460
        %462 = vdwg.mxu0
        %v463 = vmax.f32 %v435, 0.0
        %v464 = vmax.f32 %v454, 0.0
        %v465 = vmax.f32 %v437, 0.0
        %v466 = vmax.f32 %v456, 0.0
        %v467 = vmax.f32 %v440, 0.0
        %v468 = vmax.f32 %v459, 0.0
        %v469 = vmax.f32 %v442, 0.0
        %v470 = vmax.f32 %v461, 0.0
        %v471 = vld [vmem:[%s4] sm:$0xf]
        %v472 = vld [vmem:[%s4 + $0x4] sm:$0xf]
        %v473 = vld [vmem:[%s4 + $0x8] sm:$0xf]
        %v474 = vld [vmem:[%s4 + $0xc] sm:$0xf]
        %v475 = vpack.c.bf16 %v465, %v463
        %v476 = vpack.c.bf16 %v466, %v464
        %v477 = vpack.c.bf16 %v469, %v467
        %v478 = vpack.c.bf16 %v470, %v468
        %v479 = vld [vmem:[%s5] sm:$0xff]
        %v480 = vld [vmem:[%s5 + $0x8] sm:$0xff]
        %v481 = vld [vmem:[%s5 + $0x10] sm:$0xff]
        %v482 = vld [vmem:[%s5 + $0x18] sm:$0xff]
        %v483 = vld [vmem:[%s5 + $0x20] sm:$0xff]
        %v484 = vld [vmem:[%s5 + $0x28] sm:$0xff]
        %v485 = vld [vmem:[%s5 + $0x30] sm:$0xff]
        %v486 = vld [vmem:[%s5 + $0x38] sm:$0xff]
        %v491 = vunpack.c.l.b16 %v471
        %v492 = vunpack.c.l.b16 %v472
        %v493 = vunpack.c.l.b16 %v473
        %v494 = vunpack.c.l.b16 %v474
        %v495 = vpack.c.b16 %v492, %v491
        %v496 = vpack.c.b16 %v494, %v493
        %vm497 = vcmask 261120
        %v499 = vsel %vm497, %v495, 0
        %v502 = vsel %vm497, %v496, 0
        %504 = vmatpush.bf16.msra.mxu0 0
        %505 = vmatpush.bf16.msra.mxu0 0
        %506 = vmatpush.bf16.msra.mxu0 0
        %507 = vmatpush.bf16.msra.mxu0 0
        %508 = vmatpush.bf16.msra.mxu0 0
        %509 = vmatpush.bf16.msra.mxu0 0
        %510 = vmatpush.bf16.msra.mxu0 %v477
        %511 = vmatpush.bf16.msra.mxu0 %v475
        %512 = vmatmul.bf16.gmra.mxu0 %v499
        %v513 = vpop.f32.mrf.mxu0
        %v514 = vadd.f32 %v479, %v513
        %v515 = vpop.f32.mrf.mxu0
        %v516 = vadd.f32 %v481, %v515
        %517 = vmatmul.bf16.gmra.mxu0 %v502
        %v518 = vpop.f32.mrf.mxu0
        %v519 = vadd.f32 %v483, %v518
        %v520 = vpop.f32.mrf.mxu0
        %v521 = vadd.f32 %v485, %v520
        %522 = vdwg.mxu0
        %523 = vmatpush.bf16.msra.mxu0 0
        %524 = vmatpush.bf16.msra.mxu0 0
        %525 = vmatpush.bf16.msra.mxu0 0
        %526 = vmatpush.bf16.msra.mxu0 0
        %527 = vmatpush.bf16.msra.mxu0 0
        %528 = vmatpush.bf16.msra.mxu0 0
        %529 = vmatpush.bf16.msra.mxu0 %v478
        %530 = vmatpush.bf16.msra.mxu0 %v476
        %531 = vmatmul.bf16.gmra.mxu0 %v499
        %v532 = vpop.f32.mrf.mxu0
        %v533 = vadd.f32 %v480, %v532
        %v534 = vpop.f32.mrf.mxu0
        %v535 = vadd.f32 %v482, %v534
        %536 = vmatmul.bf16.gmra.mxu0 %v502
        %v537 = vpop.f32.mrf.mxu0
        %v538 = vadd.f32 %v484, %v537
        %v539 = vpop.f32.mrf.mxu0
        %v540 = vadd.f32 %v486, %v539
        %541 = vdwg.mxu0
        %v542 = vmax.f32 %v514, 0.0
        %v543 = vmax.f32 %v533, 0.0
        %v544 = vmax.f32 %v516, 0.0
        %v545 = vmax.f32 %v535, 0.0
        %v546 = vmax.f32 %v519, 0.0
        %v547 = vmax.f32 %v538, 0.0
        %v548 = vmax.f32 %v521, 0.0
        %v549 = vmax.f32 %v540, 0.0
        %s550 = scalar_lea.vmem %s4, 16
        %v551 = vld [vmem:[%s550] sm:$0xf]
        %v552 = vld [vmem:[%s550 + $0x4] sm:$0xf]
        %v553 = vld [vmem:[%s550 + $0x8] sm:$0xf]
        %v554 = vld [vmem:[%s550 + $0xc] sm:$0xf]
        %v555 = vpack.c.bf16 %v544, %v542
        %v556 = vpack.c.bf16 %v545, %v543
        %v557 = vpack.c.bf16 %v548, %v546
        %v558 = vpack.c.bf16 %v549, %v547
        %s559 = scalar_lea.vmem %s5, 64
        %v560 = vld [vmem:[%s559] sm:$0xff]
        %v561 = vld [vmem:[%s559 + $0x8] sm:$0xff]
        %v562 = vld [vmem:[%s559 + $0x10] sm:$0xff]
        %v563 = vld [vmem:[%s559 + $0x18] sm:$0xff]
        %v564 = vld [vmem:[%s559 + $0x20] sm:$0xff]
        %v565 = vld [vmem:[%s559 + $0x28] sm:$0xff]
        %v566 = vld [vmem:[%s559 + $0x30] sm:$0xff]
        %v567 = vld [vmem:[%s559 + $0x38] sm:$0xff]
        %v572 = vunpack.c.l.b16 %v551
        %v573 = vunpack.c.l.b16 %v552
        %v574 = vunpack.c.l.b16 %v553
        %v575 = vunpack.c.l.b16 %v554
        %v576 = vpack.c.b16 %v573, %v572
        %v577 = vpack.c.b16 %v575, %v574
        %v579 = vsel %vm497, %v576, 0
        %v582 = vsel %vm497, %v577, 0
        %584 = vmatpush.bf16.msra.mxu0 0
        %585 = vmatpush.bf16.msra.mxu0 0
        %586 = vmatpush.bf16.msra.mxu0 0
        %587 = vmatpush.bf16.msra.mxu0 0
        %588 = vmatpush.bf16.msra.mxu0 0
        %589 = vmatpush.bf16.msra.mxu0 0
        %590 = vmatpush.bf16.msra.mxu0 %v557
        %591 = vmatpush.bf16.msra.mxu0 %v555
        %592 = vmatmul.bf16.gmra.mxu0 %v579
        %v593 = vpop.f32.mrf.mxu0
        %v594 = vadd.f32 %v560, %v593
        %v595 = vpop.f32.mrf.mxu0
        %v596 = vadd.f32 %v562, %v595
        %597 = vmatmul.bf16.gmra.mxu0 %v582
        %v598 = vpop.f32.mrf.mxu0
        %v599 = vadd.f32 %v564, %v598
        %v600 = vpop.f32.mrf.mxu0
        %v601 = vadd.f32 %v566, %v600
        %602 = vdwg.mxu0
        %603 = vmatpush.bf16.msra.mxu0 0
        %604 = vmatpush.bf16.msra.mxu0 0
        %605 = vmatpush.bf16.msra.mxu0 0
        %606 = vmatpush.bf16.msra.mxu0 0
        %607 = vmatpush.bf16.msra.mxu0 0
        %608 = vmatpush.bf16.msra.mxu0 0
        %609 = vmatpush.bf16.msra.mxu0 %v558
        %610 = vmatpush.bf16.msra.mxu0 %v556
        %611 = vmatmul.bf16.gmra.mxu0 %v579
        %v612 = vpop.f32.mrf.mxu0
        %v613 = vadd.f32 %v561, %v612
        %v614 = vpop.f32.mrf.mxu0
        %v615 = vadd.f32 %v563, %v614
        %616 = vmatmul.bf16.gmra.mxu0 %v582
        %v617 = vpop.f32.mrf.mxu0
        %v618 = vadd.f32 %v565, %v617
        %v619 = vpop.f32.mrf.mxu0
        %v620 = vadd.f32 %v567, %v619
        %621 = vdwg.mxu0
        %v622 = vmax.f32 %v594, 0.0
        %v623 = vmax.f32 %v613, 0.0
        %v624 = vmax.f32 %v596, 0.0
        %v625 = vmax.f32 %v615, 0.0
        %v626 = vmax.f32 %v599, 0.0
        %v627 = vmax.f32 %v618, 0.0
        %v628 = vmax.f32 %v601, 0.0
        %v629 = vmax.f32 %v620, 0.0
        %s630 = scalar_lea.vmem %s4, 32
        %v631 = vld [vmem:[%s630] sm:$0xf]
        %v632 = vld [vmem:[%s630 + $0x4] sm:$0xf]
        %v633 = vld [vmem:[%s630 + $0x8] sm:$0xf]
        %v634 = vld [vmem:[%s630 + $0xc] sm:$0xf]
        %v635 = vpack.c.bf16 %v624, %v622
        %v636 = vpack.c.bf16 %v625, %v623
        %v637 = vpack.c.bf16 %v628, %v626
        %v638 = vpack.c.bf16 %v629, %v627
        %s639 = scalar_lea.vmem %s5, 128
        %v640 = vld [vmem:[%s639] sm:$0xff]
        %v641 = vld [vmem:[%s639 + $0x8] sm:$0xff]
        %v642 = vld [vmem:[%s639 + $0x10] sm:$0xff]
        %v643 = vld [vmem:[%s639 + $0x18] sm:$0xff]
        %v644 = vld [vmem:[%s639 + $0x20] sm:$0xff]
        %v645 = vld [vmem:[%s639 + $0x28] sm:$0xff]
        %v646 = vld [vmem:[%s639 + $0x30] sm:$0xff]
        %v647 = vld [vmem:[%s639 + $0x38] sm:$0xff]
        %v652 = vunpack.c.l.b16 %v631
        %v653 = vunpack.c.l.b16 %v632
        %v654 = vunpack.c.l.b16 %v633
        %v655 = vunpack.c.l.b16 %v634
        %v656 = vpack.c.b16 %v653, %v652
        %v657 = vpack.c.b16 %v655, %v654
        %v659 = vsel %vm497, %v656, 0
        %v662 = vsel %vm497, %v657, 0
        %664 = vmatpush.bf16.msra.mxu0 0
        %665 = vmatpush.bf16.msra.mxu0 0
        %666 = vmatpush.bf16.msra.mxu0 0
        %667 = vmatpush.bf16.msra.mxu0 0
        %668 = vmatpush.bf16.msra.mxu0 0
        %669 = vmatpush.bf16.msra.mxu0 0
        %670 = vmatpush.bf16.msra.mxu0 %v637
        %671 = vmatpush.bf16.msra.mxu0 %v635
        %672 = vmatmul.bf16.gmra.mxu0 %v659
        %v673 = vpop.f32.mrf.mxu0
        %v674 = vadd.f32 %v640, %v673
        %v675 = vpop.f32.mrf.mxu0
        %v676 = vadd.f32 %v642, %v675
        %677 = vmatmul.bf16.gmra.mxu0 %v662
        %v678 = vpop.f32.mrf.mxu0
        %v679 = vadd.f32 %v644, %v678
        %v680 = vpop.f32.mrf.mxu0
        %v681 = vadd.f32 %v646, %v680
        %682 = vdwg.mxu0
        %683 = vmatpush.bf16.msra.mxu0 0
        %684 = vmatpush.bf16.msra.mxu0 0
        %685 = vmatpush.bf16.msra.mxu0 0
        %686 = vmatpush.bf16.msra.mxu0 0
        %687 = vmatpush.bf16.msra.mxu0 0
        %688 = vmatpush.bf16.msra.mxu0 0
        %689 = vmatpush.bf16.msra.mxu0 %v638
        %690 = vmatpush.bf16.msra.mxu0 %v636
        %691 = vmatmul.bf16.gmra.mxu0 %v659
        %v692 = vpop.f32.mrf.mxu0
        %v693 = vadd.f32 %v641, %v692
        %v694 = vpop.f32.mrf.mxu0
        %v695 = vadd.f32 %v643, %v694
        %696 = vmatmul.bf16.gmra.mxu0 %v662
        %v697 = vpop.f32.mrf.mxu0
        %v698 = vadd.f32 %v645, %v697
        %v699 = vpop.f32.mrf.mxu0
        %v700 = vadd.f32 %v647, %v699
        %701 = vdwg.mxu0
        %v702 = vmax.f32 %v674, 0.0
        %v703 = vmax.f32 %v693, 0.0
        %v704 = vmax.f32 %v676, 0.0
        %v705 = vmax.f32 %v695, 0.0
        %v706 = vmax.f32 %v679, 0.0
        %v707 = vmax.f32 %v698, 0.0
        %v708 = vmax.f32 %v681, 0.0
        %v709 = vmax.f32 %v700, 0.0
        %v710 = vld [vmem:[%s6] sm:$0xf]
        %v711 = vld [vmem:[%s6 + $0x4] sm:$0xf]
        %v712 = vld [vmem:[%s6 + $0x8] sm:$0xf]
        %v713 = vpack.c.bf16 %v704, %v702
        %v714 = vpack.c.bf16 %v705, %v703
        %v715 = vpack.c.bf16 %v708, %v706
        %v716 = vpack.c.bf16 %v709, %v707
        %v717 = vld [vmem:[%s7] sm:$0xff]
        %v718 = vld [vmem:[%s7 + $0x8] sm:$0xff]
        %v719 = vld [vmem:[%s7 + $0x10] sm:$0xff]
        %v720 = vld [vmem:[%s7 + $0x18] sm:$0xff]
        %v721 = vld [vmem:[%s7 + $0x20] sm:$0xff]
        %v722 = vld [vmem:[%s7 + $0x28] sm:$0xff]
        %v726 = vunpack.c.l.b16 %v710
        %v727 = vunpack.c.l.b16 %v711
        %v728 = vunpack.c.l.b16 %v712
        %v729 = vpack.c.b16 %v727, %v726
        %v730 = vpack.c.b16 %v728, %v728
        %v732 = vsel %vm497, %v729, 0
        %v735 = vsel %vm497, %v730, 0
        %737 = vmatpush.bf16.msra.mxu0 0
        %738 = vmatpush.bf16.msra.mxu0 0
        %739 = vmatpush.bf16.msra.mxu0 0
        %740 = vmatpush.bf16.msra.mxu0 0
        %741 = vmatpush.bf16.msra.mxu0 0
        %742 = vmatpush.bf16.msra.mxu0 0
        %743 = vmatpush.bf16.msra.mxu0 %v715
        %744 = vmatpush.bf16.msra.mxu0 %v713
        %745 = vmatmul.bf16.gmra.mxu0 %v732
        %v746 = vpop.f32.mrf.mxu0
        %v747 = vadd.f32 %v717, %v746
        %v748 = vpop.f32.mrf.mxu0
        %v749 = vadd.f32 %v719, %v748
        %750 = vmatmul.bf16.gmra.mxu0 %v735
        %v751 = vpop.f32.mrf.mxu0
        %v752 = vadd.f32 %v721, %v751
        %v753 = vpop.f32.mrf.mxu0
        %754 = vdwg.mxu0
        %755 = vmatpush.bf16.msra.mxu0 0
        %756 = vmatpush.bf16.msra.mxu0 0
        %757 = vmatpush.bf16.msra.mxu0 0
        %758 = vmatpush.bf16.msra.mxu0 0
        %759 = vmatpush.bf16.msra.mxu0 0
        %760 = vmatpush.bf16.msra.mxu0 0
        %761 = vmatpush.bf16.msra.mxu0 %v716
        %762 = vmatpush.bf16.msra.mxu0 %v714
        %763 = vmatmul.bf16.gmra.mxu0 %v732
        %v764 = vpop.f32.mrf.mxu0
        %v765 = vadd.f32 %v718, %v764
        %v766 = vpop.f32.mrf.mxu0
        %v767 = vadd.f32 %v720, %v766
        %768 = vmatmul.bf16.gmra.mxu0 %v735
        %v769 = vpop.f32.mrf.mxu0
        %v770 = vadd.f32 %v722, %v769
        %v771 = vpop.f32.mrf.mxu0
        %772 = vdwg.mxu0
        %v773 = vsub.f32 %v390, %v747
        %v774 = vsub.f32 %v391, %v765
        %v775 = vsub.f32 %v392, %v749
        %v776 = vsub.f32 %v393, %v767
        %v777 = vmul.f32 %v773, %v382
        %v778 = vmul.f32 %v774, %v383
        %v779 = vmul.f32 %v775, %v384
        %v780 = vmul.f32 %v776, %v385
        %v781 = vadd.f32 %v752, 0.0
        %v782 = vadd.f32 %v770, 0.0
        %s783 = scalar_lea.vmem %s2, 16
        %v784 = vld [vmem:[%s783] sm:$0xf]
        %v785 = vld [vmem:[%s783 + $0x4] sm:$0xf]
        %v786 = vld [vmem:[%s783 + $0x8] sm:$0xf]
        %v787 = vld [vmem:[%s783 + $0xc] sm:$0xf]
        %v788 = vpack.c.bf16 %v779, %v777
        %v789 = vpack.c.bf16 %v780, %v778
        %s790 = scalar_lea.vmem %s3, 64
        %v791 = vld [vmem:[%s790] sm:$0xff]
        %v792 = vld [vmem:[%s790 + $0x8] sm:$0xff]
        %v793 = vld [vmem:[%s790 + $0x10] sm:$0xff]
        %v794 = vld [vmem:[%s790 + $0x18] sm:$0xff]
        %v795 = vld [vmem:[%s790 + $0x20] sm:$0xff]
        %v796 = vld [vmem:[%s790 + $0x28] sm:$0xff]
        %v797 = vld [vmem:[%s790 + $0x30] sm:$0xff]
        %v798 = vld [vmem:[%s790 + $0x38] sm:$0xff]
        %v803 = vunpack.c.l.b16 %v784
        %v804 = vunpack.c.l.b16 %v785
        %v805 = vunpack.c.l.b16 %v786
        %v806 = vunpack.c.l.b16 %v787
        %v807 = vpack.c.b16 %v804, %v803
        %v808 = vpack.c.b16 %v806, %v805
        %v810 = vsel %vm418, %v807, 0
        %v813 = vsel %vm418, %v808, 0
        %815 = vmatpush.bf16.msra.mxu0 0
        %816 = vmatpush.bf16.msra.mxu0 0
        %817 = vmatpush.bf16.msra.mxu0 0
        %818 = vmatpush.bf16.msra.mxu0 0
        %819 = vmatpush.bf16.msra.mxu0 0
        %820 = vmatpush.bf16.msra.mxu0 0
        %821 = vmatpush.bf16.msra.mxu0 0
        %822 = vmatpush.bf16.msra.mxu0 %v788
        %823 = vmatmul.bf16.gmra.mxu0 %v810
        %v824 = vpop.f32.mrf.mxu0
        %v825 = vadd.f32 %v791, %v824
        %v826 = vpop.f32.mrf.mxu0
        %v827 = vadd.f32 %v793, %v826
        %828 = vmatmul.bf16.gmra.mxu0 %v813
        %v829 = vpop.f32.mrf.mxu0
        %v830 = vadd.f32 %v795, %v829
        %v831 = vpop.f32.mrf.mxu0
        %v832 = vadd.f32 %v797, %v831
        %833 = vdwg.mxu0
        %834 = vmatpush.bf16.msra.mxu0 0
        %835 = vmatpush.bf16.msra.mxu0 0
        %836 = vmatpush.bf16.msra.mxu0 0
        %837 = vmatpush.bf16.msra.mxu0 0
        %838 = vmatpush.bf16.msra.mxu0 0
        %839 = vmatpush.bf16.msra.mxu0 0
        %840 = vmatpush.bf16.msra.mxu0 0
        %841 = vmatpush.bf16.msra.mxu0 %v789
        %842 = vmatmul.bf16.gmra.mxu0 %v810
        %v843 = vpop.f32.mrf.mxu0
        %v844 = vadd.f32 %v792, %v843
        %v845 = vpop.f32.mrf.mxu0
        %v846 = vadd.f32 %v794, %v845
        %847 = vmatmul.bf16.gmra.mxu0 %v813
        %v848 = vpop.f32.mrf.mxu0
        %v849 = vadd.f32 %v796, %v848
        %v850 = vpop.f32.mrf.mxu0
        %v851 = vadd.f32 %v798, %v850
        %852 = vdwg.mxu0
        %v853 = vmax.f32 %v825, 0.0
        %v854 = vmax.f32 %v844, 0.0
        %v855 = vmax.f32 %v827, 0.0
        %v856 = vmax.f32 %v846, 0.0
        %v857 = vmax.f32 %v830, 0.0
        %v858 = vmax.f32 %v849, 0.0
        %v859 = vmax.f32 %v832, 0.0
        %v860 = vmax.f32 %v851, 0.0
        %s861 = scalar_lea.vmem %s4, 48
        %v862 = vld [vmem:[%s861] sm:$0xf]
        %v863 = vld [vmem:[%s861 + $0x4] sm:$0xf]
        %v864 = vld [vmem:[%s861 + $0x8] sm:$0xf]
        %v865 = vld [vmem:[%s861 + $0xc] sm:$0xf]
        %v866 = vpack.c.bf16 %v855, %v853
        %v867 = vpack.c.bf16 %v856, %v854
        %v868 = vpack.c.bf16 %v859, %v857
        %v869 = vpack.c.bf16 %v860, %v858
        %s870 = scalar_lea.vmem %s5, 192
        %v871 = vld [vmem:[%s870] sm:$0xff]
        %v872 = vld [vmem:[%s870 + $0x8] sm:$0xff]
        %v873 = vld [vmem:[%s870 + $0x10] sm:$0xff]
        %v874 = vld [vmem:[%s870 + $0x18] sm:$0xff]
        %v875 = vld [vmem:[%s870 + $0x20] sm:$0xff]
        %v876 = vld [vmem:[%s870 + $0x28] sm:$0xff]
        %v877 = vld [vmem:[%s870 + $0x30] sm:$0xff]
        %v878 = vld [vmem:[%s870 + $0x38] sm:$0xff]
        %v883 = vunpack.c.l.b16 %v862
        %v884 = vunpack.c.l.b16 %v863
        %v885 = vunpack.c.l.b16 %v864
        %v886 = vunpack.c.l.b16 %v865
        %v887 = vpack.c.b16 %v884, %v883
        %v888 = vpack.c.b16 %v886, %v885
        %v890 = vsel %vm497, %v887, 0
        %v893 = vsel %vm497, %v888, 0
        %895 = vmatpush.bf16.msra.mxu0 0
        %896 = vmatpush.bf16.msra.mxu0 0
        %897 = vmatpush.bf16.msra.mxu0 0
        %898 = vmatpush.bf16.msra.mxu0 0
        %899 = vmatpush.bf16.msra.mxu0 0
        %900 = vmatpush.bf16.msra.mxu0 0
        %901 = vmatpush.bf16.msra.mxu0 %v868
        %902 = vmatpush.bf16.msra.mxu0 %v866
        %903 = vmatmul.bf16.gmra.mxu0 %v890
        %v904 = vpop.f32.mrf.mxu0
        %v905 = vadd.f32 %v871, %v904
        %v906 = vpop.f32.mrf.mxu0
        %v907 = vadd.f32 %v873, %v906
        %908 = vmatmul.bf16.gmra.mxu0 %v893
        %v909 = vpop.f32.mrf.mxu0
        %v910 = vadd.f32 %v875, %v909
        %v911 = vpop.f32.mrf.mxu0
        %v912 = vadd.f32 %v877, %v911
        %913 = vdwg.mxu0
        %914 = vmatpush.bf16.msra.mxu0 0
        %915 = vmatpush.bf16.msra.mxu0 0
        %916 = vmatpush.bf16.msra.mxu0 0
        %917 = vmatpush.bf16.msra.mxu0 0
        %918 = vmatpush.bf16.msra.mxu0 0
        %919 = vmatpush.bf16.msra.mxu0 0
        %920 = vmatpush.bf16.msra.mxu0 %v869
        %921 = vmatpush.bf16.msra.mxu0 %v867
        %922 = vmatmul.bf16.gmra.mxu0 %v890
        %v923 = vpop.f32.mrf.mxu0
        %v924 = vadd.f32 %v872, %v923
        %v925 = vpop.f32.mrf.mxu0
        %v926 = vadd.f32 %v874, %v925
        %927 = vmatmul.bf16.gmra.mxu0 %v893
        %v928 = vpop.f32.mrf.mxu0
        %v929 = vadd.f32 %v876, %v928
        %v930 = vpop.f32.mrf.mxu0
        %v931 = vadd.f32 %v878, %v930
        %932 = vdwg.mxu0
        %v933 = vmax.f32 %v905, 0.0
        %v934 = vmax.f32 %v924, 0.0
        %v935 = vmax.f32 %v907, 0.0
        %v936 = vmax.f32 %v926, 0.0
        %v937 = vmax.f32 %v910, 0.0
        %v938 = vmax.f32 %v929, 0.0
        %v939 = vmax.f32 %v912, 0.0
        %v940 = vmax.f32 %v931, 0.0
        %s941 = scalar_lea.vmem %s4, 64
        %v942 = vld [vmem:[%s941] sm:$0xf]
        %v943 = vld [vmem:[%s941 + $0x4] sm:$0xf]
        %v944 = vld [vmem:[%s941 + $0x8] sm:$0xf]
        %v945 = vld [vmem:[%s941 + $0xc] sm:$0xf]
        %v946 = vpack.c.bf16 %v935, %v933
        %v947 = vpack.c.bf16 %v936, %v934
        %v948 = vpack.c.bf16 %v939, %v937
        %v949 = vpack.c.bf16 %v940, %v938
        %s950 = scalar_lea.vmem %s5, 256
        %v951 = vld [vmem:[%s950] sm:$0xff]
        %v952 = vld [vmem:[%s950 + $0x8] sm:$0xff]
        %v953 = vld [vmem:[%s950 + $0x10] sm:$0xff]
        %v954 = vld [vmem:[%s950 + $0x18] sm:$0xff]
        %v955 = vld [vmem:[%s950 + $0x20] sm:$0xff]
        %v956 = vld [vmem:[%s950 + $0x28] sm:$0xff]
        %v957 = vld [vmem:[%s950 + $0x30] sm:$0xff]
        %v958 = vld [vmem:[%s950 + $0x38] sm:$0xff]
        %v963 = vunpack.c.l.b16 %v942
        %v964 = vunpack.c.l.b16 %v943
        %v965 = vunpack.c.l.b16 %v944
        %v966 = vunpack.c.l.b16 %v945
        %v967 = vpack.c.b16 %v964, %v963
        %v968 = vpack.c.b16 %v966, %v965
        %v970 = vsel %vm497, %v967, 0
        %v973 = vsel %vm497, %v968, 0
        %975 = vmatpush.bf16.msra.mxu0 0
        %976 = vmatpush.bf16.msra.mxu0 0
        %977 = vmatpush.bf16.msra.mxu0 0
        %978 = vmatpush.bf16.msra.mxu0 0
        %979 = vmatpush.bf16.msra.mxu0 0
        %980 = vmatpush.bf16.msra.mxu0 0
        %981 = vmatpush.bf16.msra.mxu0 %v948
        %982 = vmatpush.bf16.msra.mxu0 %v946
        %983 = vmatmul.bf16.gmra.mxu0 %v970
        %v984 = vpop.f32.mrf.mxu0
        %v985 = vadd.f32 %v951, %v984
        %v986 = vpop.f32.mrf.mxu0
        %v987 = vadd.f32 %v953, %v986
        %988 = vmatmul.bf16.gmra.mxu0 %v973
        %v989 = vpop.f32.mrf.mxu0
        %v990 = vadd.f32 %v955, %v989
        %v991 = vpop.f32.mrf.mxu0
        %v992 = vadd.f32 %v957, %v991
        %993 = vdwg.mxu0
        %994 = vmatpush.bf16.msra.mxu0 0
        %995 = vmatpush.bf16.msra.mxu0 0
        %996 = vmatpush.bf16.msra.mxu0 0
        %997 = vmatpush.bf16.msra.mxu0 0
        %998 = vmatpush.bf16.msra.mxu0 0
        %999 = vmatpush.bf16.msra.mxu0 0
        %1000 = vmatpush.bf16.msra.mxu0 %v949
        %1001 = vmatpush.bf16.msra.mxu0 %v947
        %1002 = vmatmul.bf16.gmra.mxu0 %v970
        %v1003 = vpop.f32.mrf.mxu0
        %v1004 = vadd.f32 %v952, %v1003
        %v1005 = vpop.f32.mrf.mxu0
        %v1006 = vadd.f32 %v954, %v1005
        %1007 = vmatmul.bf16.gmra.mxu0 %v973
        %v1008 = vpop.f32.mrf.mxu0
        %v1009 = vadd.f32 %v956, %v1008
        %v1010 = vpop.f32.mrf.mxu0
        %v1011 = vadd.f32 %v958, %v1010
        %1012 = vdwg.mxu0
        %v1013 = vmax.f32 %v985, 0.0
        %v1014 = vmax.f32 %v1004, 0.0
        %v1015 = vmax.f32 %v987, 0.0
        %v1016 = vmax.f32 %v1006, 0.0
        %v1017 = vmax.f32 %v990, 0.0
        %v1018 = vmax.f32 %v1009, 0.0
        %v1019 = vmax.f32 %v992, 0.0
        %v1020 = vmax.f32 %v1011, 0.0
        %s1021 = scalar_lea.vmem %s4, 80
        %v1022 = vld [vmem:[%s1021] sm:$0xf]
        %v1023 = vld [vmem:[%s1021 + $0x4] sm:$0xf]
        %v1024 = vld [vmem:[%s1021 + $0x8] sm:$0xf]
        %v1025 = vld [vmem:[%s1021 + $0xc] sm:$0xf]
        %v1026 = vpack.c.bf16 %v1015, %v1013
        %v1027 = vpack.c.bf16 %v1016, %v1014
        %v1028 = vpack.c.bf16 %v1019, %v1017
        %v1029 = vpack.c.bf16 %v1020, %v1018
        %s1030 = scalar_lea.vmem %s5, 320
        %v1031 = vld [vmem:[%s1030] sm:$0xff]
        %v1032 = vld [vmem:[%s1030 + $0x8] sm:$0xff]
        %v1033 = vld [vmem:[%s1030 + $0x10] sm:$0xff]
        %v1034 = vld [vmem:[%s1030 + $0x18] sm:$0xff]
        %v1035 = vld [vmem:[%s1030 + $0x20] sm:$0xff]
        %v1036 = vld [vmem:[%s1030 + $0x28] sm:$0xff]
        %v1037 = vld [vmem:[%s1030 + $0x30] sm:$0xff]
        %v1038 = vld [vmem:[%s1030 + $0x38] sm:$0xff]
        %v1043 = vunpack.c.l.b16 %v1022
        %v1044 = vunpack.c.l.b16 %v1023
        %v1045 = vunpack.c.l.b16 %v1024
        %v1046 = vunpack.c.l.b16 %v1025
        %v1047 = vpack.c.b16 %v1044, %v1043
        %v1048 = vpack.c.b16 %v1046, %v1045
        %v1050 = vsel %vm497, %v1047, 0
        %v1053 = vsel %vm497, %v1048, 0
        %1055 = vmatpush.bf16.msra.mxu0 0
        %1056 = vmatpush.bf16.msra.mxu0 0
        %1057 = vmatpush.bf16.msra.mxu0 0
        %1058 = vmatpush.bf16.msra.mxu0 0
        %1059 = vmatpush.bf16.msra.mxu0 0
        %1060 = vmatpush.bf16.msra.mxu0 0
        %1061 = vmatpush.bf16.msra.mxu0 %v1028
        %1062 = vmatpush.bf16.msra.mxu0 %v1026
        %1063 = vmatmul.bf16.gmra.mxu0 %v1050
        %v1064 = vpop.f32.mrf.mxu0
        %v1065 = vadd.f32 %v1031, %v1064
        %v1066 = vpop.f32.mrf.mxu0
        %v1067 = vadd.f32 %v1033, %v1066
        %1068 = vmatmul.bf16.gmra.mxu0 %v1053
        %v1069 = vpop.f32.mrf.mxu0
        %v1070 = vadd.f32 %v1035, %v1069
        %v1071 = vpop.f32.mrf.mxu0
        %v1072 = vadd.f32 %v1037, %v1071
        %1073 = vdwg.mxu0
        %1074 = vmatpush.bf16.msra.mxu0 0
        %1075 = vmatpush.bf16.msra.mxu0 0
        %1076 = vmatpush.bf16.msra.mxu0 0
        %1077 = vmatpush.bf16.msra.mxu0 0
        %1078 = vmatpush.bf16.msra.mxu0 0
        %1079 = vmatpush.bf16.msra.mxu0 0
        %1080 = vmatpush.bf16.msra.mxu0 %v1029
        %1081 = vmatpush.bf16.msra.mxu0 %v1027
        %1082 = vmatmul.bf16.gmra.mxu0 %v1050
        %v1083 = vpop.f32.mrf.mxu0
        %v1084 = vadd.f32 %v1032, %v1083
        %v1085 = vpop.f32.mrf.mxu0
        %v1086 = vadd.f32 %v1034, %v1085
        %1087 = vmatmul.bf16.gmra.mxu0 %v1053
        %v1088 = vpop.f32.mrf.mxu0
        %v1089 = vadd.f32 %v1036, %v1088
        %v1090 = vpop.f32.mrf.mxu0
        %v1091 = vadd.f32 %v1038, %v1090
        %1092 = vdwg.mxu0
        %v1093 = vmax.f32 %v1065, 0.0
        %v1094 = vmax.f32 %v1084, 0.0
        %v1095 = vmax.f32 %v1067, 0.0
        %v1096 = vmax.f32 %v1086, 0.0
        %v1097 = vmax.f32 %v1070, 0.0
        %v1098 = vmax.f32 %v1089, 0.0
        %v1099 = vmax.f32 %v1072, 0.0
        %v1100 = vmax.f32 %v1091, 0.0
        %s1101 = scalar_lea.vmem %s6, 12
        %v1102 = vld [vmem:[%s1101] sm:$0xf]
        %v1103 = vld [vmem:[%s1101 + $0x4] sm:$0xf]
        %v1104 = vld [vmem:[%s1101 + $0x8] sm:$0xf]
        %v1105 = vpack.c.bf16 %v1095, %v1093
        %v1106 = vpack.c.bf16 %v1096, %v1094
        %v1107 = vpack.c.bf16 %v1099, %v1097
        %v1108 = vpack.c.bf16 %v1100, %v1098
        %s1109 = scalar_lea.vmem %s7, 48
        %v1110 = vld [vmem:[%s1109] sm:$0xff]
        %v1111 = vld [vmem:[%s1109 + $0x8] sm:$0xff]
        %v1112 = vld [vmem:[%s1109 + $0x10] sm:$0xff]
        %v1113 = vld [vmem:[%s1109 + $0x18] sm:$0xff]
        %v1114 = vld [vmem:[%s1109 + $0x20] sm:$0xff]
        %v1115 = vld [vmem:[%s1109 + $0x28] sm:$0xff]
        %v1119 = vunpack.c.l.b16 %v1102
        %v1120 = vunpack.c.l.b16 %v1103
        %v1121 = vunpack.c.l.b16 %v1104
        %v1122 = vpack.c.b16 %v1120, %v1119
        %v1123 = vpack.c.b16 %v1121, %v1121
        %v1125 = vsel %vm497, %v1122, 0
        %v1128 = vsel %vm497, %v1123, 0
        %1130 = vmatpush.bf16.msra.mxu0 0
        %1131 = vmatpush.bf16.msra.mxu0 0
        %1132 = vmatpush.bf16.msra.mxu0 0
        %1133 = vmatpush.bf16.msra.mxu0 0
        %1134 = vmatpush.bf16.msra.mxu0 0
        %1135 = vmatpush.bf16.msra.mxu0 0
        %1136 = vmatpush.bf16.msra.mxu0 %v1107
        %1137 = vmatpush.bf16.msra.mxu0 %v1105
        %1138 = vmatmul.bf16.gmra.mxu0 %v1125
        %v1139 = vpop.f32.mrf.mxu0
        %v1140 = vadd.f32 %v1110, %v1139
        %v1141 = vpop.f32.mrf.mxu0
        %v1142 = vadd.f32 %v1112, %v1141
        %1143 = vmatmul.bf16.gmra.mxu0 %v1128
        %v1144 = vpop.f32.mrf.mxu0
        %v1145 = vadd.f32 %v1114, %v1144
        %v1146 = vpop.f32.mrf.mxu0
        %1147 = vdwg.mxu0
        %1148 = vmatpush.bf16.msra.mxu0 0
        %1149 = vmatpush.bf16.msra.mxu0 0
        %1150 = vmatpush.bf16.msra.mxu0 0
        %1151 = vmatpush.bf16.msra.mxu0 0
        %1152 = vmatpush.bf16.msra.mxu0 0
        %1153 = vmatpush.bf16.msra.mxu0 0
        %1154 = vmatpush.bf16.msra.mxu0 %v1108
        %1155 = vmatpush.bf16.msra.mxu0 %v1106
        %1156 = vmatmul.bf16.gmra.mxu0 %v1125
        %v1157 = vpop.f32.mrf.mxu0
        %v1158 = vadd.f32 %v1111, %v1157
        %v1159 = vpop.f32.mrf.mxu0
        %v1160 = vadd.f32 %v1113, %v1159
        %1161 = vmatmul.bf16.gmra.mxu0 %v1128
        %v1162 = vpop.f32.mrf.mxu0
        %v1163 = vadd.f32 %v1115, %v1162
        %v1164 = vpop.f32.mrf.mxu0
        %1165 = vdwg.mxu0
        %v1166 = vsub.f32 %v777, %v1140
        %v1167 = vsub.f32 %v778, %v1158
        %v1168 = vsub.f32 %v779, %v1142
        %v1169 = vsub.f32 %v780, %v1160
        %v1170 = vmul.f32 %v1166, %v382
        %v1171 = vmul.f32 %v1167, %v383
        %v1172 = vmul.f32 %v1168, %v384
        %v1173 = vmul.f32 %v1169, %v385
        %v1174 = vadd.f32 %v781, %v1145
        %v1175 = vadd.f32 %v782, %v1163
        %s1176 = scalar_lea.vmem %s2, 32
        %v1177 = vld [vmem:[%s1176] sm:$0xf]
        %v1178 = vld [vmem:[%s1176 + $0x4] sm:$0xf]
        %v1179 = vld [vmem:[%s1176 + $0x8] sm:$0xf]
        %v1180 = vld [vmem:[%s1176 + $0xc] sm:$0xf]
        %v1181 = vpack.c.bf16 %v1172, %v1170
        %v1182 = vpack.c.bf16 %v1173, %v1171
        %s1183 = scalar_lea.vmem %s3, 128
        %v1184 = vld [vmem:[%s1183] sm:$0xff]
        %v1185 = vld [vmem:[%s1183 + $0x8] sm:$0xff]
        %v1186 = vld [vmem:[%s1183 + $0x10] sm:$0xff]
        %v1187 = vld [vmem:[%s1183 + $0x18] sm:$0xff]
        %v1188 = vld [vmem:[%s1183 + $0x20] sm:$0xff]
        %v1189 = vld [vmem:[%s1183 + $0x28] sm:$0xff]
        %v1190 = vld [vmem:[%s1183 + $0x30] sm:$0xff]
        %v1191 = vld [vmem:[%s1183 + $0x38] sm:$0xff]
        %v1196 = vunpack.c.l.b16 %v1177
        %v1197 = vunpack.c.l.b16 %v1178
        %v1198 = vunpack.c.l.b16 %v1179
        %v1199 = vunpack.c.l.b16 %v1180
        %v1200 = vpack.c.b16 %v1197, %v1196
        %v1201 = vpack.c.b16 %v1199, %v1198
        %v1203 = vsel %vm418, %v1200, 0
        %v1206 = vsel %vm418, %v1201, 0
        %1208 = vmatpush.bf16.msra.mxu0 0
        %1209 = vmatpush.bf16.msra.mxu0 0
        %1210 = vmatpush.bf16.msra.mxu0 0
        %1211 = vmatpush.bf16.msra.mxu0 0
        %1212 = vmatpush.bf16.msra.mxu0 0
        %1213 = vmatpush.bf16.msra.mxu0 0
        %1214 = vmatpush.bf16.msra.mxu0 0
        %1215 = vmatpush.bf16.msra.mxu0 %v1181
        %1216 = vmatmul.bf16.gmra.mxu0 %v1203
        %v1217 = vpop.f32.mrf.mxu0
        %v1218 = vadd.f32 %v1184, %v1217
        %v1219 = vpop.f32.mrf.mxu0
        %v1220 = vadd.f32 %v1186, %v1219
        %1221 = vmatmul.bf16.gmra.mxu0 %v1206
        %v1222 = vpop.f32.mrf.mxu0
        %v1223 = vadd.f32 %v1188, %v1222
        %v1224 = vpop.f32.mrf.mxu0
        %v1225 = vadd.f32 %v1190, %v1224
        %1226 = vdwg.mxu0
        %1227 = vmatpush.bf16.msra.mxu0 0
        %1228 = vmatpush.bf16.msra.mxu0 0
        %1229 = vmatpush.bf16.msra.mxu0 0
        %1230 = vmatpush.bf16.msra.mxu0 0
        %1231 = vmatpush.bf16.msra.mxu0 0
        %1232 = vmatpush.bf16.msra.mxu0 0
        %1233 = vmatpush.bf16.msra.mxu0 0
        %1234 = vmatpush.bf16.msra.mxu0 %v1182
        %1235 = vmatmul.bf16.gmra.mxu0 %v1203
        %v1236 = vpop.f32.mrf.mxu0
        %v1237 = vadd.f32 %v1185, %v1236
        %v1238 = vpop.f32.mrf.mxu0
        %v1239 = vadd.f32 %v1187, %v1238
        %1240 = vmatmul.bf16.gmra.mxu0 %v1206
        %v1241 = vpop.f32.mrf.mxu0
        %v1242 = vadd.f32 %v1189, %v1241
        %v1243 = vpop.f32.mrf.mxu0
        %v1244 = vadd.f32 %v1191, %v1243
        %1245 = vdwg.mxu0
        %v1246 = vmax.f32 %v1218, 0.0
        %v1247 = vmax.f32 %v1237, 0.0
        %v1248 = vmax.f32 %v1220, 0.0
        %v1249 = vmax.f32 %v1239, 0.0
        %v1250 = vmax.f32 %v1223, 0.0
        %v1251 = vmax.f32 %v1242, 0.0
        %v1252 = vmax.f32 %v1225, 0.0
        %v1253 = vmax.f32 %v1244, 0.0
        %s1254 = scalar_lea.vmem %s4, 96
        %v1255 = vld [vmem:[%s1254] sm:$0xf]
        %v1256 = vld [vmem:[%s1254 + $0x4] sm:$0xf]
        %v1257 = vld [vmem:[%s1254 + $0x8] sm:$0xf]
        %v1258 = vld [vmem:[%s1254 + $0xc] sm:$0xf]
        %v1259 = vpack.c.bf16 %v1248, %v1246
        %v1260 = vpack.c.bf16 %v1249, %v1247
        %v1261 = vpack.c.bf16 %v1252, %v1250
        %v1262 = vpack.c.bf16 %v1253, %v1251
        %s1263 = scalar_lea.vmem %s5, 384
        %v1264 = vld [vmem:[%s1263] sm:$0xff]
        %v1265 = vld [vmem:[%s1263 + $0x8] sm:$0xff]
        %v1266 = vld [vmem:[%s1263 + $0x10] sm:$0xff]
        %v1267 = vld [vmem:[%s1263 + $0x18] sm:$0xff]
        %v1268 = vld [vmem:[%s1263 + $0x20] sm:$0xff]
        %v1269 = vld [vmem:[%s1263 + $0x28] sm:$0xff]
        %v1270 = vld [vmem:[%s1263 + $0x30] sm:$0xff]
        %v1271 = vld [vmem:[%s1263 + $0x38] sm:$0xff]
        %v1276 = vunpack.c.l.b16 %v1255
        %v1277 = vunpack.c.l.b16 %v1256
        %v1278 = vunpack.c.l.b16 %v1257
        %v1279 = vunpack.c.l.b16 %v1258
        %v1280 = vpack.c.b16 %v1277, %v1276
        %v1281 = vpack.c.b16 %v1279, %v1278
        %v1283 = vsel %vm497, %v1280, 0
        %v1286 = vsel %vm497, %v1281, 0
        %1288 = vmatpush.bf16.msra.mxu0 0
        %1289 = vmatpush.bf16.msra.mxu0 0
        %1290 = vmatpush.bf16.msra.mxu0 0
        %1291 = vmatpush.bf16.msra.mxu0 0
        %1292 = vmatpush.bf16.msra.mxu0 0
        %1293 = vmatpush.bf16.msra.mxu0 0
        %1294 = vmatpush.bf16.msra.mxu0 %v1261
        %1295 = vmatpush.bf16.msra.mxu0 %v1259
        %1296 = vmatmul.bf16.gmra.mxu0 %v1283
        %v1297 = vpop.f32.mrf.mxu0
        %v1298 = vadd.f32 %v1264, %v1297
        %v1299 = vpop.f32.mrf.mxu0
        %v1300 = vadd.f32 %v1266, %v1299
        %1301 = vmatmul.bf16.gmra.mxu0 %v1286
        %v1302 = vpop.f32.mrf.mxu0
        %v1303 = vadd.f32 %v1268, %v1302
        %v1304 = vpop.f32.mrf.mxu0
        %v1305 = vadd.f32 %v1270, %v1304
        %1306 = vdwg.mxu0
        %1307 = vmatpush.bf16.msra.mxu0 0
        %1308 = vmatpush.bf16.msra.mxu0 0
        %1309 = vmatpush.bf16.msra.mxu0 0
        %1310 = vmatpush.bf16.msra.mxu0 0
        %1311 = vmatpush.bf16.msra.mxu0 0
        %1312 = vmatpush.bf16.msra.mxu0 0
        %1313 = vmatpush.bf16.msra.mxu0 %v1262
        %1314 = vmatpush.bf16.msra.mxu0 %v1260
        %1315 = vmatmul.bf16.gmra.mxu0 %v1283
        %v1316 = vpop.f32.mrf.mxu0
        %v1317 = vadd.f32 %v1265, %v1316
        %v1318 = vpop.f32.mrf.mxu0
        %v1319 = vadd.f32 %v1267, %v1318
        %1320 = vmatmul.bf16.gmra.mxu0 %v1286
        %v1321 = vpop.f32.mrf.mxu0
        %v1322 = vadd.f32 %v1269, %v1321
        %v1323 = vpop.f32.mrf.mxu0
        %v1324 = vadd.f32 %v1271, %v1323
        %1325 = vdwg.mxu0
        %v1326 = vmax.f32 %v1298, 0.0
        %v1327 = vmax.f32 %v1317, 0.0
        %v1328 = vmax.f32 %v1300, 0.0
        %v1329 = vmax.f32 %v1319, 0.0
        %v1330 = vmax.f32 %v1303, 0.0
        %v1331 = vmax.f32 %v1322, 0.0
        %v1332 = vmax.f32 %v1305, 0.0
        %v1333 = vmax.f32 %v1324, 0.0
        %s1334 = scalar_lea.vmem %s4, 112
        %v1335 = vld [vmem:[%s1334] sm:$0xf]
        %v1336 = vld [vmem:[%s1334 + $0x4] sm:$0xf]
        %v1337 = vld [vmem:[%s1334 + $0x8] sm:$0xf]
        %v1338 = vld [vmem:[%s1334 + $0xc] sm:$0xf]
        %v1339 = vpack.c.bf16 %v1328, %v1326
        %v1340 = vpack.c.bf16 %v1329, %v1327
        %v1341 = vpack.c.bf16 %v1332, %v1330
        %v1342 = vpack.c.bf16 %v1333, %v1331
        %s1343 = scalar_lea.vmem %s5, 448
        %v1344 = vld [vmem:[%s1343] sm:$0xff]
        %v1345 = vld [vmem:[%s1343 + $0x8] sm:$0xff]
        %v1346 = vld [vmem:[%s1343 + $0x10] sm:$0xff]
        %v1347 = vld [vmem:[%s1343 + $0x18] sm:$0xff]
        %v1348 = vld [vmem:[%s1343 + $0x20] sm:$0xff]
        %v1349 = vld [vmem:[%s1343 + $0x28] sm:$0xff]
        %v1350 = vld [vmem:[%s1343 + $0x30] sm:$0xff]
        %v1351 = vld [vmem:[%s1343 + $0x38] sm:$0xff]
        %v1356 = vunpack.c.l.b16 %v1335
        %v1357 = vunpack.c.l.b16 %v1336
        %v1358 = vunpack.c.l.b16 %v1337
        %v1359 = vunpack.c.l.b16 %v1338
        %v1360 = vpack.c.b16 %v1357, %v1356
        %v1361 = vpack.c.b16 %v1359, %v1358
        %v1363 = vsel %vm497, %v1360, 0
        %v1366 = vsel %vm497, %v1361, 0
        %1368 = vmatpush.bf16.msra.mxu0 0
        %1369 = vmatpush.bf16.msra.mxu0 0
        %1370 = vmatpush.bf16.msra.mxu0 0
        %1371 = vmatpush.bf16.msra.mxu0 0
        %1372 = vmatpush.bf16.msra.mxu0 0
        %1373 = vmatpush.bf16.msra.mxu0 0
        %1374 = vmatpush.bf16.msra.mxu0 %v1341
        %1375 = vmatpush.bf16.msra.mxu0 %v1339
        %1376 = vmatmul.bf16.gmra.mxu0 %v1363
        %v1377 = vpop.f32.mrf.mxu0
        %v1378 = vadd.f32 %v1344, %v1377
        %v1379 = vpop.f32.mrf.mxu0
        %v1380 = vadd.f32 %v1346, %v1379
        %1381 = vmatmul.bf16.gmra.mxu0 %v1366
        %v1382 = vpop.f32.mrf.mxu0
        %v1383 = vadd.f32 %v1348, %v1382
        %v1384 = vpop.f32.mrf.mxu0
        %v1385 = vadd.f32 %v1350, %v1384
        %1386 = vdwg.mxu0
        %1387 = vmatpush.bf16.msra.mxu0 0
        %1388 = vmatpush.bf16.msra.mxu0 0
        %1389 = vmatpush.bf16.msra.mxu0 0
        %1390 = vmatpush.bf16.msra.mxu0 0
        %1391 = vmatpush.bf16.msra.mxu0 0
        %1392 = vmatpush.bf16.msra.mxu0 0
        %1393 = vmatpush.bf16.msra.mxu0 %v1342
        %1394 = vmatpush.bf16.msra.mxu0 %v1340
        %1395 = vmatmul.bf16.gmra.mxu0 %v1363
        %v1396 = vpop.f32.mrf.mxu0
        %v1397 = vadd.f32 %v1345, %v1396
        %v1398 = vpop.f32.mrf.mxu0
        %v1399 = vadd.f32 %v1347, %v1398
        %1400 = vmatmul.bf16.gmra.mxu0 %v1366
        %v1401 = vpop.f32.mrf.mxu0
        %v1402 = vadd.f32 %v1349, %v1401
        %v1403 = vpop.f32.mrf.mxu0
        %v1404 = vadd.f32 %v1351, %v1403
        %1405 = vdwg.mxu0
        %v1406 = vmax.f32 %v1378, 0.0
        %v1407 = vmax.f32 %v1397, 0.0
        %v1408 = vmax.f32 %v1380, 0.0
        %v1409 = vmax.f32 %v1399, 0.0
        %v1410 = vmax.f32 %v1383, 0.0
        %v1411 = vmax.f32 %v1402, 0.0
        %v1412 = vmax.f32 %v1385, 0.0
        %v1413 = vmax.f32 %v1404, 0.0
        %s1414 = scalar_lea.vmem %s4, 128
        %v1415 = vld [vmem:[%s1414] sm:$0xf]
        %v1416 = vld [vmem:[%s1414 + $0x4] sm:$0xf]
        %v1417 = vld [vmem:[%s1414 + $0x8] sm:$0xf]
        %v1418 = vld [vmem:[%s1414 + $0xc] sm:$0xf]
        %v1419 = vpack.c.bf16 %v1408, %v1406
        %v1420 = vpack.c.bf16 %v1409, %v1407
        %v1421 = vpack.c.bf16 %v1412, %v1410
        %v1422 = vpack.c.bf16 %v1413, %v1411
        %s1423 = scalar_lea.vmem %s5, 512
        %v1424 = vld [vmem:[%s1423] sm:$0xff]
        %v1425 = vld [vmem:[%s1423 + $0x8] sm:$0xff]
        %v1426 = vld [vmem:[%s1423 + $0x10] sm:$0xff]
        %v1427 = vld [vmem:[%s1423 + $0x18] sm:$0xff]
        %v1428 = vld [vmem:[%s1423 + $0x20] sm:$0xff]
        %v1429 = vld [vmem:[%s1423 + $0x28] sm:$0xff]
        %v1430 = vld [vmem:[%s1423 + $0x30] sm:$0xff]
        %v1431 = vld [vmem:[%s1423 + $0x38] sm:$0xff]
        %v1436 = vunpack.c.l.b16 %v1415
        %v1437 = vunpack.c.l.b16 %v1416
        %v1438 = vunpack.c.l.b16 %v1417
        %v1439 = vunpack.c.l.b16 %v1418
        %v1440 = vpack.c.b16 %v1437, %v1436
        %v1441 = vpack.c.b16 %v1439, %v1438
        %v1443 = vsel %vm497, %v1440, 0
        %v1446 = vsel %vm497, %v1441, 0
        %1448 = vmatpush.bf16.msra.mxu0 0
        %1449 = vmatpush.bf16.msra.mxu0 0
        %1450 = vmatpush.bf16.msra.mxu0 0
        %1451 = vmatpush.bf16.msra.mxu0 0
        %1452 = vmatpush.bf16.msra.mxu0 0
        %1453 = vmatpush.bf16.msra.mxu0 0
        %1454 = vmatpush.bf16.msra.mxu0 %v1421
        %1455 = vmatpush.bf16.msra.mxu0 %v1419
        %1456 = vmatmul.bf16.gmra.mxu0 %v1443
        %v1457 = vpop.f32.mrf.mxu0
        %v1458 = vadd.f32 %v1424, %v1457
        %v1459 = vpop.f32.mrf.mxu0
        %v1460 = vadd.f32 %v1426, %v1459
        %1461 = vmatmul.bf16.gmra.mxu0 %v1446
        %v1462 = vpop.f32.mrf.mxu0
        %v1463 = vadd.f32 %v1428, %v1462
        %v1464 = vpop.f32.mrf.mxu0
        %v1465 = vadd.f32 %v1430, %v1464
        %1466 = vdwg.mxu0
        %1467 = vmatpush.bf16.msra.mxu0 0
        %1468 = vmatpush.bf16.msra.mxu0 0
        %1469 = vmatpush.bf16.msra.mxu0 0
        %1470 = vmatpush.bf16.msra.mxu0 0
        %1471 = vmatpush.bf16.msra.mxu0 0
        %1472 = vmatpush.bf16.msra.mxu0 0
        %1473 = vmatpush.bf16.msra.mxu0 %v1422
        %1474 = vmatpush.bf16.msra.mxu0 %v1420
        %1475 = vmatmul.bf16.gmra.mxu0 %v1443
        %v1476 = vpop.f32.mrf.mxu0
        %v1477 = vadd.f32 %v1425, %v1476
        %v1478 = vpop.f32.mrf.mxu0
        %v1479 = vadd.f32 %v1427, %v1478
        %1480 = vmatmul.bf16.gmra.mxu0 %v1446
        %v1481 = vpop.f32.mrf.mxu0
        %v1482 = vadd.f32 %v1429, %v1481
        %v1483 = vpop.f32.mrf.mxu0
        %v1484 = vadd.f32 %v1431, %v1483
        %1485 = vdwg.mxu0
        %v1486 = vmax.f32 %v1458, 0.0
        %v1487 = vmax.f32 %v1477, 0.0
        %v1488 = vmax.f32 %v1460, 0.0
        %v1489 = vmax.f32 %v1479, 0.0
        %v1490 = vmax.f32 %v1463, 0.0
        %v1491 = vmax.f32 %v1482, 0.0
        %v1492 = vmax.f32 %v1465, 0.0
        %v1493 = vmax.f32 %v1484, 0.0
        %s1494 = scalar_lea.vmem %s6, 24
        %v1495 = vld [vmem:[%s1494] sm:$0xf]
        %v1496 = vld [vmem:[%s1494 + $0x4] sm:$0xf]
        %v1497 = vld [vmem:[%s1494 + $0x8] sm:$0xf]
        %v1498 = vpack.c.bf16 %v1488, %v1486
        %v1499 = vpack.c.bf16 %v1489, %v1487
        %v1500 = vpack.c.bf16 %v1492, %v1490
        %v1501 = vpack.c.bf16 %v1493, %v1491
        %s1502 = scalar_lea.vmem %s7, 96
        %v1503 = vld [vmem:[%s1502 + $0x20] sm:$0xff]
        %v1504 = vld [vmem:[%s1502 + $0x28] sm:$0xff]
        %v1508 = vunpack.c.l.b16 %v1495
        %v1509 = vunpack.c.l.b16 %v1496
        %v1510 = vunpack.c.l.b16 %v1497
        %v1511 = vpack.c.b16 %v1509, %v1508
        %v1512 = vpack.c.b16 %v1510, %v1510
        %v1514 = vsel %vm497, %v1511, 0
        %v1517 = vsel %vm497, %v1512, 0
        %1519 = vmatpush.bf16.msra.mxu0 0
        %1520 = vmatpush.bf16.msra.mxu0 0
        %1521 = vmatpush.bf16.msra.mxu0 0
        %1522 = vmatpush.bf16.msra.mxu0 0
        %1523 = vmatpush.bf16.msra.mxu0 0
        %1524 = vmatpush.bf16.msra.mxu0 0
        %1525 = vmatpush.bf16.msra.mxu0 %v1500
        %1526 = vmatpush.bf16.msra.mxu0 %v1498
        %1527 = vmatmul.bf16.gmra.mxu0 %v1514
        %v1528 = vpop.f32.mrf.mxu0
        %v1529 = vpop.f32.mrf.mxu0
        %1530 = vmatmul.bf16.gmra.mxu0 %v1517
        %v1531 = vpop.f32.mrf.mxu0
        %v1532 = vadd.f32 %v1503, %v1531
        %v1533 = vpop.f32.mrf.mxu0
        %1534 = vdwg.mxu0
        %1535 = vmatpush.bf16.msra.mxu0 0
        %1536 = vmatpush.bf16.msra.mxu0 0
        %1537 = vmatpush.bf16.msra.mxu0 0
        %1538 = vmatpush.bf16.msra.mxu0 0
        %1539 = vmatpush.bf16.msra.mxu0 0
        %1540 = vmatpush.bf16.msra.mxu0 0
        %1541 = vmatpush.bf16.msra.mxu0 %v1501
        %1542 = vmatpush.bf16.msra.mxu0 %v1499
        %1543 = vmatmul.bf16.gmra.mxu0 %v1514
        %v1544 = vpop.f32.mrf.mxu0
        %v1545 = vpop.f32.mrf.mxu0
        %1546 = vmatmul.bf16.gmra.mxu0 %v1517
        %v1547 = vpop.f32.mrf.mxu0
        %v1548 = vadd.f32 %v1504, %v1547
        %v1549 = vpop.f32.mrf.mxu0
        %1550 = vdwg.mxu0
        %v1551 = vadd.f32 %v1174, %v1532
        %v1552 = vadd.f32 %v1175, %v1548
        %1553 = vst [vmem:[%s379] sm:$0xff] %v1551
        %1554 = vst [vmem:[%s379 + $0x8] sm:$0xff] %v1552
        %s1555 = smul.u32 2, %s19
        %p1556 = scmp.lt.s32.totalorder %s1555, 3
        %s1557 = scalar_select %p1556, %s1555, 3
        %s1558 = smul.addr %s1557, 8
        %s1559 = scalar_lea.vmem %s8, %s1558
        // Predicated region
        $region99: #{nbeats_prediction_forward.1} parent=89 // pred_check
          %p1560 = pneg %p215
        $region100: #{nbeats_prediction_forward.1} parent=89 // pred_check_branch
          %1562 = sbr.rel (%p1560) target = $region102
        $region101: #{nbeats_prediction_forward.1} parent=89 // pred_region
          %s1563 = smul.u32 2, %s19
        $region102: #{nbeats_prediction_forward.1} parent=89 // pred_fallthru
          _
      $region90: #{nbeats_prediction_forward.1} parent=5 // pred_fallthru
        _
      %p1564 = scmp.le.s32.totalorder 2, %s14
      // Predicated region
      $region103: #{nbeats_prediction_forward.1} parent=5 // pred_check
        %p1565 = pneg %p1564
      $region104: #{nbeats_prediction_forward.1} parent=5 // pred_check_branch
        %1567 = sbr.rel (%p1565) target = $region106
      $region105: #{nbeats_prediction_forward.1} parent=5 // pred_region
        %s1568 = ssub.s32 %s14, 2
        // Predicated region
        $region107: #{nbeats_prediction_forward.1} parent=105 // pred_check
          %p1569 = pneg %p221
        $region108: #{nbeats_prediction_forward.1} parent=105 // pred_check_branch
          %1571 = sbr.rel (%p1569) target = $region110
        $region109: #{nbeats_prediction_forward.1} parent=105 // pred_region
          %s1572 = smul.u32 2, %s20
          %p1573 = scmp.lt.s32.totalorder %s1572, 3
          %s1574 = scalar_select %p1573, %s1572, 3
          %s1575 = smul.addr %s1574, 8
          %s1576 = scalar_lea.vmem %s8, %s1575
        $region110: #{nbeats_prediction_forward.1} parent=105 // pred_fallthru
          _
      $region106: #{nbeats_prediction_forward.1} parent=5 // pred_fallthru
        _
    $region6: #{nbeats_prediction_forward.1} parent=1 // loop_footer
      %s18 = sadd.s32 1, %s14
    $region7: #{nbeats_prediction_forward.1} parent=1 // loop_footer_branch
      %13 = sbr.rel target = $region3
    $region8: #{nbeats_prediction_forward.1} parent=1 // loop_exit
      _

</llo_original>
